<compile_context>
chip_gen: v6e
topology: v6e:2x2x1
jax: 0.10.0
libtpu: 0.0.40
codegen_flags: <defaults>
</compile_context>

<pallas_src>
import functools
import math

import jax
import jax.numpy as jnp
from jax import lax
from jax.experimental import pallas as pl
from jax.experimental.pallas import tpu as pltpu

# ---- small synthetic BERT config ----
VOCAB = 128
HIDDEN = 32
N_HEADS = 2
HEAD_DIM = HIDDEN // N_HEADS
N_LAYERS = 2
INTERMEDIATE = 64
MAX_POS = 16
TYPE_VOCAB = 2
N_CLASSES = 3
N_CLASSES_PAD = 128          # lane-dense classifier output, sliced back in the wrapper
QKV_PAD = 128                # lane-dense fused QKV projection width (>= 3*HIDDEN)
LN_EPS = 1e-12               # BERT LayerNorm eps
INV_SQRT2 = 0.7071067811865475
ATTN_SCALE = 1.0 / math.sqrt(HEAD_DIM)


# ----------------------------- in-kernel helpers -----------------------------

def _layer_norm(x, g, b):
    mean = jnp.mean(x, axis=-1, keepdims=True)
    c = x - mean
    var = jnp.mean(c * c, axis=-1, keepdims=True)
    return c * lax.rsqrt(var + LN_EPS) * g + b


def _gelu(x):
    # exact (erf-based) GELU, matching HF BERT's "gelu" activation.
    # (tanh-approx would offload to the idle EUP on v6e/v7x but changes numerics.)
    return 0.5 * x * (1.0 + lax.erf(x * INV_SQRT2))


def _softmax_last(s):
    mx = jnp.max(s, axis=-1, keepdims=True)
    e = jnp.exp(s - mx)
    # approx=True uses the EUP reciprocal (free slot); ~2^-12 rel. error — switch to
    # approx=False if bit-closeness vs the PyTorch reference is required.
    return e * pl.reciprocal(jnp.sum(e, axis=-1, keepdims=True), approx=True)


# ----------------------------- fused forward kernel -----------------------------

def _bert_forward_kernel(
        # ---- inputs (VMEM) ----
        emb_ref, embg_ref, embb_ref, mask_ref,
        wqkv_ref, bqkv_ref, wo_ref, bo_ref, ln1g_ref, ln1b_ref,
        wi_ref, bi_ref, wf_ref, bf_ref, ln2g_ref, ln2b_ref,
        clsw_ref, clsb_ref, labels_ref,
        # ---- outputs ----
        logits_ref,                       # VMEM [B, N_CLASSES_PAD] (lane-dense)
        loss_ref,                         # SMEM (1, 1) f32
        # ---- scratch ----
        x_scr,                            # VMEM [M, H], carried across the layer grid
        *, batch, seq, n_heads, head_dim, d_model, n_classes):
    layer = pl.program_id(0)
    m = batch * seq

    # ---- grid step 0: embedding LayerNorm (word+pos+type already summed in wrapper) ----
    @pl.when(layer == 0)
    def _():
        # TODO(synk): embedding dropout is identity at inference (no-op).
        x_scr[...] = _layer_norm(emb_ref[...], embg_ref[...], embb_ref[...])

    x = x_scr[...]
    mask = mask_ref[...]                                     # [B, S, S] additive bias

    # ---- fused QKV projection: one [M,H] @ [H,128] matmul; scale folded into Wq ----
    qkv = jnp.dot(x, wqkv_ref[0], preferred_element_type=jnp.float32) + bqkv_ref[0]

    ctx_heads = []
    for h in range(n_heads):
        lo = h * head_dim
        qh = qkv[:, lo:lo + head_dim].reshape(batch, seq, head_dim)
        kh = qkv[:, d_model + lo:d_model + lo + head_dim].reshape(batch, seq, head_dim)
        vh = qkv[:, 2 * d_model + lo:2 * d_model + lo + head_dim].reshape(
            batch, seq, head_dim)
        s = jnp.einsum('bqd,bkd->bqk', qh, kh,
                       preferred_element_type=jnp.float32)   # [B, S, S] (pre-scaled)
        p = _softmax_last(s + mask)                          # mask already [B,S,S]
        # TODO(synk): attention-probability dropout is identity at inference.
        ctx = jnp.einsum('bqk,bkd->bqd', p, vh,
                         preferred_element_type=jnp.float32) # [B, S, Dh]
        ctx_heads.append(ctx.reshape(m, head_dim))
    ctx = jnp.concatenate(ctx_heads, axis=-1)                # [M, H]

    # single output projection over all heads
    attn = jnp.dot(ctx, wo_ref[0], preferred_element_type=jnp.float32) + bo_ref[0]
    # TODO(synk): post-attention hidden dropout is identity at inference.
    x = _layer_norm(attn + x, ln1g_ref[0], ln1b_ref[0])

    inter = _gelu(jnp.dot(x, wi_ref[0], preferred_element_type=jnp.float32) + bi_ref[0])
    ffn = jnp.dot(inter, wf_ref[0], preferred_element_type=jnp.float32) + bf_ref[0]
    x = _layer_norm(ffn + x, ln2g_ref[0], ln2b_ref[0])

    x_scr[...] = x                                           # carry to next layer

    # ---- last grid step: CLS pooling + classifier head + mean CE loss ----
    @pl.when(layer == pl.num_programs(0) - 1)
    def _():
        cls = x.reshape(batch, seq, d_model)[:, 0, :]        # [B, H], single strided slice
        # TODO(synk): dropout(0.1) on cls_rep is identity at inference (no-op).
        logits = (jnp.dot(cls, clsw_ref[...], preferred_element_type=jnp.float32)
                  + clsb_ref[...])                           # [B, 128] lane-dense
        logits_ref[...] = logits

        # mean cross-entropy over the real classes (padded columns masked out)
        c_pad = logits.shape[-1]
        col = lax.broadcasted_iota(jnp.int32, (batch, c_pad), 1)
        masked = jnp.where(col < n_classes, logits, -1e30)
        mx = jnp.max(masked, axis=-1, keepdims=True)
        lse = mx + jnp.log(jnp.sum(jnp.exp(masked - mx), axis=-1, keepdims=True))
        logp = masked - lse
        onehot = col == labels_ref[...]                      # [B,1] labels, vectorised
        loss_ref[0, 0] = -jnp.sum(jnp.where(onehot, logp, 0.0)) / batch


# ----------------------------- pallas_call wrapper -----------------------------

def _full_spec(arr):
    shape = arr.shape
    rank = len(shape)
    return pl.BlockSpec(shape, lambda l: (0,) * rank)


def _layer_spec(arr):
    shape = arr.shape
    return pl.BlockSpec((1,) + shape[1:], lambda l: (l,) + (0,) * (len(shape) - 1))


def bert_classifier_forward(params, input_ids, attention_mask,
                            labels=None, token_type_ids=None):
    B, S = input_ids.shape
    M = B * S
    if token_type_ids is None:
        token_type_ids = jnp.zeros((B, S), jnp.int32)

    # Embedding gathers + sum stay in plain JAX (XLA fuses them); a single [M, H]
    # tensor enters the kernel.
    emb = (jnp.take(params["word_emb"], input_ids.reshape(-1), axis=0)
           + jnp.take(params["type_emb"], token_type_ids.reshape(-1), axis=0)
           + jnp.tile(params["pos_emb"][:S], (B, 1)))

    # BERT extended attention mask, pre-broadcast over the query dim: [B, S, S].
    add_mask = jnp.broadcast_to(
        ((1.0 - attention_mask.astype(jnp.float32)) * -1e9)[:, None, :], (B, S, S))

    # TODO(synk): when labels is None the kernel still computes a (discarded) loss with
    # dummy zero labels; it is a handful of VPU ops on a [B,128] tile.
    lbl = (jnp.zeros((B, 1), jnp.int32) if labels is None
           else labels.reshape(B, 1).astype(jnp.int32))

    st = params["layers"]
    leading = (emb, params["emb_ln_g"], params["emb_ln_b"], add_mask)
    stacked = (st["wqkv"], st["bqkv"], st["wo"], st["bo"], st["ln1_g"], st["ln1_b"],
               st["wi"], st["bi"], st["wf"], st["bf"], st["ln2_g"], st["ln2_b"])
    trailing = (params["cls_w_pad"], params["cls_b_pad"], lbl)

    in_specs = ([_full_spec(a) for a in leading]
                + [_layer_spec(a) for a in stacked]
                + [_full_spec(a) for a in trailing])

    kern = functools.partial(_bert_forward_kernel, batch=B, seq=S,
                             n_heads=N_HEADS, head_dim=HEAD_DIM,
                             d_model=HIDDEN, n_classes=N_CLASSES)

    grid_spec = pltpu.PrefetchScalarGridSpec(
        num_scalar_prefetch=0,
        grid=(N_LAYERS,),
        in_specs=in_specs,
        out_specs=(pl.BlockSpec((B, N_CLASSES_PAD), lambda l: (0, 0)),
                   pl.BlockSpec(memory_space=pltpu.MemorySpace.SMEM)),
        scratch_shapes=[pltpu.VMEM((M, HIDDEN), jnp.float32)],
    )

    logits_pad, loss = pl.pallas_call(
        kern,
        grid_spec=grid_spec,
        out_shape=(jax.ShapeDtypeStruct((B, N_CLASSES_PAD), jnp.float32),
                   jax.ShapeDtypeStruct((1, 1), jnp.float32)),
        compiler_params=pltpu.CompilerParams(
            # The layer axis carries state (activation scratch) -> "arbitrary".
            # TODO(synk): for v7x (2 TensorCores) add a leading "parallel" batch/M-tile
            # grid axis once B*S is large enough to split.
            dimension_semantics=("arbitrary",)),
    )(*leading, *stacked, *trailing)

    return {
        "loss": None if labels is None else loss[0, 0],
        "logits": logits_pad[:, :N_CLASSES],
        # BertModel defaults: output_hidden_states / output_attentions are False.
        "hidden_states": None,
        "attentions": None,
    }


# ----------------------------- parameters -----------------------------

def init_params(key):
    def normal(k, shape):
        return 0.02 * jax.random.normal(k, shape, dtype=jnp.float32)

    keys = iter(jax.random.split(key, 12))
    params = {
        "word_emb": normal(next(keys), (VOCAB, HIDDEN)),
        "pos_emb": normal(next(keys), (MAX_POS, HIDDEN)),
        "type_emb": normal(next(keys), (TYPE_VOCAB, HIDDEN)),
        "emb_ln_g": jnp.ones((1, HIDDEN), jnp.float32),
        "emb_ln_b": jnp.zeros((1, HIDDEN), jnp.float32),
    }
    cls_w = normal(next(keys), (HIDDEN, N_CLASSES))
    params["cls_w_pad"] = jnp.pad(cls_w, ((0, 0), (0, N_CLASSES_PAD - N_CLASSES)))
    params["cls_b_pad"] = jnp.zeros((1, N_CLASSES_PAD), jnp.float32)

    def sn(k, shape):               # per-layer weights stacked on a leading L axis
        return 0.02 * jax.random.normal(k, (N_LAYERS,) + shape, dtype=jnp.float32)

    # Fused QKV weight: concat(Wq * 1/sqrt(head_dim), Wk, Wv) along the output axis,
    # zero-padded to a lane-dense 128 columns.  For a real checkpoint this fold/concat/
    # pad is a one-time free transformation at load.
    wq = sn(next(keys), (HIDDEN, HIDDEN))
    wk = sn(next(keys), (HIDDEN, HIDDEN))
    wv = sn(next(keys), (HIDDEN, HIDDEN))
    wqkv = jnp.concatenate([wq * ATTN_SCALE, wk, wv], axis=2)
    wqkv_pad = jnp.pad(wqkv, ((0, 0), (0, 0), (0, QKV_PAD - 3 * HIDDEN)))
    # q/k/v biases are zero at init; a real checkpoint would use
    # concat(bq * ATTN_SCALE, bk, bv) padded to QKV_PAD.
    bqkv_pad = jnp.zeros((N_LAYERS, 1, QKV_PAD), jnp.float32)

    zeros_h = jnp.zeros((N_LAYERS, 1, HIDDEN), jnp.float32)
    ones_h = jnp.ones((N_LAYERS, 1, HIDDEN), jnp.float32)
    params["layers"] = {
        "wqkv": wqkv_pad, "bqkv": bqkv_pad,
        "wo": sn(next(keys), (HIDDEN, HIDDEN)), "bo": zeros_h,
        "ln1_g": ones_h, "ln1_b": zeros_h,
        "wi": sn(next(keys), (HIDDEN, INTERMEDIATE)),
        "bi": jnp.zeros((N_LAYERS, 1, INTERMEDIATE), jnp.float32),
        "wf": sn(next(keys), (INTERMEDIATE, HIDDEN)), "bf": zeros_h,
        "ln2_g": ones_h, "ln2_b": zeros_h,
    }
    return params


# ----------------------------- main -----------------------------

if __name__ == "__main__":
    key = jax.random.PRNGKey(0)
    pkey, ikey, lkey = jax.random.split(key, 3)

    params = init_params(pkey)

    B, S = 2, 8
    input_ids = jax.random.randint(ikey, (B, S), 0, VOCAB, dtype=jnp.int32)
    attention_mask = jnp.ones((B, S), jnp.int32)
    labels = jax.random.randint(lkey, (B,), 0, N_CLASSES, dtype=jnp.int32)

    out = bert_classifier_forward(params, input_ids, attention_mask, labels=labels)

    jax.block_until_ready(out["logits"])
    jax.block_until_ready(out["loss"])
    assert out["logits"].shape == (B, N_CLASSES)
    assert out["loss"].shape == ()
    assert bool(jnp.all(jnp.isfinite(out["logits"])))
    assert bool(jnp.isfinite(out["loss"]))
    print("KERNEL_OK")
</pallas_src>

<mosaic_0001>
module attributes {stable_mosaic.version = 11 : i64} {
  func.func @_bert_forward_kernel(%arg0: i32, %arg1: memref<16x32xf32, #tpu.memory_space<vmem>>, %arg2: memref<1x32xf32, #tpu.memory_space<vmem>>, %arg3: memref<1x32xf32, #tpu.memory_space<vmem>>, %arg4: memref<2x8x8xf32, #tpu.memory_space<vmem>>, %arg5: memref<1x32x128xf32, #tpu.memory_space<vmem>>, %arg6: memref<1x1x128xf32, #tpu.memory_space<vmem>>, %arg7: memref<1x32x32xf32, #tpu.memory_space<vmem>>, %arg8: memref<1x1x32xf32, #tpu.memory_space<vmem>>, %arg9: memref<1x1x32xf32, #tpu.memory_space<vmem>>, %arg10: memref<1x1x32xf32, #tpu.memory_space<vmem>>, %arg11: memref<1x32x64xf32, #tpu.memory_space<vmem>>, %arg12: memref<1x1x64xf32, #tpu.memory_space<vmem>>, %arg13: memref<1x64x32xf32, #tpu.memory_space<vmem>>, %arg14: memref<1x1x32xf32, #tpu.memory_space<vmem>>, %arg15: memref<1x1x32xf32, #tpu.memory_space<vmem>>, %arg16: memref<1x1x32xf32, #tpu.memory_space<vmem>>, %arg17: memref<32x128xf32, #tpu.memory_space<vmem>>, %arg18: memref<1x128xf32, #tpu.memory_space<vmem>>, %arg19: memref<2x1xi32, #tpu.memory_space<vmem>>, %arg20: memref<2x128xf32, #tpu.memory_space<vmem>>, %arg21: memref<1x1xf32, #tpu.memory_space<smem>>, %arg22: memref<16x32xf32, #tpu.memory_space<vmem>>) attributes {dimension_semantics = [#tpu.dimension_semantics<arbitrary>], iteration_bounds = array<i64: 2>, scalar_prefetch = 0 : i64, scratch_operands = 1 : i64, tpu.core_type = #tpu.core_type<tc>, window_params = [{pipeline_mode = #tpu.pipeline_mode<synchronous>, transform_indices = @transform_0, window_bounds = array<i64: 16, 32>}, {pipeline_mode = #tpu.pipeline_mode<synchronous>, transform_indices = @transform_1, window_bounds = array<i64: 1, 32>}, {pipeline_mode = #tpu.pipeline_mode<synchronous>, transform_indices = @transform_2, window_bounds = array<i64: 1, 32>}, {pipeline_mode = #tpu.pipeline_mode<synchronous>, transform_indices = @transform_3, window_bounds = array<i64: 2, 8, 8>}, {transform_indices = @transform_4, window_bounds = array<i64: 1, 32, 128>}, {transform_indices = @transform_5, window_bounds = array<i64: 1, 1, 128>}, {transform_indices = @transform_6, window_bounds = array<i64: 1, 32, 32>}, {transform_indices = @transform_7, window_bounds = array<i64: 1, 1, 32>}, {transform_indices = @transform_8, window_bounds = array<i64: 1, 1, 32>}, {transform_indices = @transform_9, window_bounds = array<i64: 1, 1, 32>}, {transform_indices = @transform_10, window_bounds = array<i64: 1, 32, 64>}, {transform_indices = @transform_11, window_bounds = array<i64: 1, 1, 64>}, {transform_indices = @transform_12, window_bounds = array<i64: 1, 64, 32>}, {transform_indices = @transform_13, window_bounds = array<i64: 1, 1, 32>}, {transform_indices = @transform_14, window_bounds = array<i64: 1, 1, 32>}, {transform_indices = @transform_15, window_bounds = array<i64: 1, 1, 32>}, {pipeline_mode = #tpu.pipeline_mode<synchronous>, transform_indices = @transform_16, window_bounds = array<i64: 32, 128>}, {pipeline_mode = #tpu.pipeline_mode<synchronous>, transform_indices = @transform_17, window_bounds = array<i64: 1, 128>}, {pipeline_mode = #tpu.pipeline_mode<synchronous>, transform_indices = @transform_18, window_bounds = array<i64: 2, 1>}, {pipeline_mode = #tpu.pipeline_mode<synchronous>, transform_indices = @transform_19, window_bounds = array<i64: 2, 128>}, {transform_indices = @transform_20, window_bounds = array<i64: 1, 1>}]} {
    %c0_i32 = arith.constant 0 : i32
    %0 = arith.cmpi eq, %arg0, %c0_i32 : i32
    %1 = arith.extui %0 : i1 to i32
    %c0_i32_0 = arith.constant 0 : i32
    %2 = arith.cmpi ne, %1, %c0_i32_0 : i32
    scf.if %2 {
      %c0_68 = arith.constant 0 : index
      %c0_69 = arith.constant 0 : index
      %136 = vector.load %arg1[%c0_68, %c0_69] : memref<16x32xf32, #tpu.memory_space<vmem>>, vector<16x32xf32>
      %c0_70 = arith.constant 0 : index
      %c0_71 = arith.constant 0 : index
      %137 = vector.load %arg2[%c0_70, %c0_71] : memref<1x32xf32, #tpu.memory_space<vmem>>, vector<1x32xf32>
      %c0_72 = arith.constant 0 : index
      %c0_73 = arith.constant 0 : index
      %138 = vector.load %arg3[%c0_72, %c0_73] : memref<1x32xf32, #tpu.memory_space<vmem>>, vector<1x32xf32>
      %cst_74 = arith.constant dense<0.000000e+00> : vector<16xf32>
      %139 = vector.multi_reduction <add>, %136, %cst_74 [1] : vector<16x32xf32> to vector<16xf32>
      %140 = vector.shape_cast %139 : vector<16xf32> to vector<16x1xf32>
      %cst_75 = arith.constant 3.200000e+01 : f32
      %141 = vector.broadcast %cst_75 : f32 to vector<16x1xf32>
      %142 = arith.divf %140, %141 : vector<16x1xf32>
      %143 = vector.broadcast %142 : vector<16x1xf32> to vector<16x32xf32>
      %144 = arith.subf %136, %143 : vector<16x32xf32>
      %145 = arith.mulf %144, %144 : vector<16x32xf32>
      %cst_76 = arith.constant dense<0.000000e+00> : vector<16xf32>
      %146 = vector.multi_reduction <add>, %145, %cst_76 [1] : vector<16x32xf32> to vector<16xf32>
      %147 = vector.shape_cast %146 : vector<16xf32> to vector<16x1xf32>
      %cst_77 = arith.constant 3.200000e+01 : f32
      %148 = vector.broadcast %cst_77 : f32 to vector<16x1xf32>
      %149 = arith.divf %147, %148 : vector<16x1xf32>
      %cst_78 = arith.constant 9.99999996E-13 : f32
      %150 = vector.broadcast %cst_78 : f32 to vector<16x1xf32>
      %151 = arith.addf %149, %150 : vector<16x1xf32>
      %152 = math.rsqrt %151 : vector<16x1xf32>
      %153 = vector.broadcast %152 : vector<16x1xf32> to vector<16x32xf32>
      %154 = arith.mulf %144, %153 : vector<16x32xf32>
      %155 = vector.broadcast %137 : vector<1x32xf32> to vector<16x32xf32>
      %156 = arith.mulf %154, %155 : vector<16x32xf32>
      %157 = vector.broadcast %138 : vector<1x32xf32> to vector<16x32xf32>
      %158 = arith.addf %156, %157 : vector<16x32xf32>
      %c0_79 = arith.constant 0 : index
      %c0_80 = arith.constant 0 : index
      %159 = vector.load %arg22[%c0_79, %c0_80] : memref<16x32xf32, #tpu.memory_space<vmem>>, vector<16x32xf32>
      tpu.vector_store %arg22[%c0_79, %c0_80], %158 {strides = array<i32>} : memref<16x32xf32, #tpu.memory_space<vmem>>, vector<16x32xf32>,
    } else {
    }
    %c0 = arith.constant 0 : index
    %c0_1 = arith.constant 0 : index
    %3 = vector.load %arg22[%c0, %c0_1] : memref<16x32xf32, #tpu.memory_space<vmem>>, vector<16x32xf32>
    %c0_2 = arith.constant 0 : index
    %c0_3 = arith.constant 0 : index
    %c0_4 = arith.constant 0 : index
    %4 = vector.load %arg4[%c0_2, %c0_3, %c0_4] : memref<2x8x8xf32, #tpu.memory_space<vmem>>, vector<2x8x8xf32>
    %c0_5 = arith.constant 0 : index
    %c0_6 = arith.constant 0 : index
    %c0_7 = arith.constant 0 : index
    %5 = vector.load %arg5[%c0_5, %c0_6, %c0_7] : memref<1x32x128xf32, #tpu.memory_space<vmem>>, vector<1x32x128xf32>
    %6 = vector.shape_cast %5 : vector<1x32x128xf32> to vector<32x128xf32>
    %cst = arith.constant dense<0.000000e+00> : vector<16x128xf32>
    %7 = tpu.matmul %3, %6, %cst {dimension_numbers = #tpu.dot_dimension_numbers<[1], [0], [0], [1], [0, 0, 1, 1], [], []>} : vector<16x32xf32>, vector<32x128xf32>, vector<16x128xf32> -> vector<16x128xf32>
    %c0_8 = arith.constant 0 : index
    %c0_9 = arith.constant 0 : index
    %c0_10 = arith.constant 0 : index
    %8 = vector.load %arg6[%c0_8, %c0_9, %c0_10] : memref<1x1x128xf32, #tpu.memory_space<vmem>>, vector<1x1x128xf32>
    %9 = vector.shape_cast %8 : vector<1x1x128xf32> to vector<1x128xf32>
    %10 = vector.broadcast %9 : vector<1x128xf32> to vector<16x128xf32>
    %11 = arith.addf %7, %10 : vector<16x128xf32>
    %12 = vector.extract_strided_slice %11 {offsets = [0, 0], sizes = [16, 16], strides = [1, 1]} : vector<16x128xf32> to vector<16x16xf32>
    %13 = vector.shape_cast %12 : vector<16x16xf32> to vector<2x8x16xf32>
    %14 = vector.extract_strided_slice %11 {offsets = [0, 32], sizes = [16, 16], strides = [1, 1]} : vector<16x128xf32> to vector<16x16xf32>
    %15 = vector.shape_cast %14 : vector<16x16xf32> to vector<2x8x16xf32>
    %16 = vector.extract_strided_slice %11 {offsets = [0, 64], sizes = [16, 16], strides = [1, 1]} : vector<16x128xf32> to vector<16x16xf32>
    %17 = vector.shape_cast %16 : vector<16x16xf32> to vector<2x8x16xf32>
    "tpu.trace_start"() <{level = 10 : i32, message = "bqd,bkd->bqk"}> : () -> ()
    %cst_11 = arith.constant dense<0.000000e+00> : vector<2x8x8xf32>
    %18 = tpu.matmul %13, %15, %cst_11 {dimension_numbers = #tpu.dot_dimension_numbers<[2], [2], [1], [1], [0, 0, 0, 1, 1, 1], [0], [0]>} : vector<2x8x16xf32>, vector<2x8x16xf32>, vector<2x8x8xf32> -> vector<2x8x8xf32>
    "tpu.trace_stop"() : () -> ()
    %19 = arith.addf %18, %4 : vector<2x8x8xf32>
    %cst_12 = arith.constant dense<0xFF800000> : vector<2x8xf32>
    %20 = vector.multi_reduction <maximumf>, %19, %cst_12 [2] : vector<2x8x8xf32> to vector<2x8xf32>
    %21 = vector.shape_cast %20 : vector<2x8xf32> to vector<2x8x1xf32>
    %22 = vector.broadcast %21 : vector<2x8x1xf32> to vector<2x8x8xf32>
    %23 = arith.subf %19, %22 : vector<2x8x8xf32>
    %24 = math.exp %23 : vector<2x8x8xf32>
    %cst_13 = arith.constant dense<0.000000e+00> : vector<2x8xf32>
    %25 = vector.multi_reduction <add>, %24, %cst_13 [2] : vector<2x8x8xf32> to vector<2x8xf32>
    %26 = vector.shape_cast %25 : vector<2x8xf32> to vector<2x8x1xf32>
    %27 = tpu.reciprocal %26 {approx = true} : vector<2x8x1xf32> -> vector<2x8x1xf32>
    %28 = vector.broadcast %27 : vector<2x8x1xf32> to vector<2x8x8xf32>
    %29 = arith.mulf %24, %28 : vector<2x8x8xf32>
    "tpu.trace_start"() <{level = 10 : i32, message = "bqk,bkd->bqd"}> : () -> ()
    %cst_14 = arith.constant dense<0.000000e+00> : vector<2x8x16xf32>
    %30 = tpu.matmul %29, %17, %cst_14 {dimension_numbers = #tpu.dot_dimension_numbers<[2], [1], [1], [2], [0, 0, 0, 1, 1, 2], [0], [0]>} : vector<2x8x8xf32>, vector<2x8x16xf32>, vector<2x8x16xf32> -> vector<2x8x16xf32>
    "tpu.trace_stop"() : () -> ()
    %31 = vector.shape_cast %30 : vector<2x8x16xf32> to vector<16x16xf32>
    %32 = vector.extract_strided_slice %11 {offsets = [0, 16], sizes = [16, 16], strides = [1, 1]} : vector<16x128xf32> to vector<16x16xf32>
    %33 = vector.shape_cast %32 : vector<16x16xf32> to vector<2x8x16xf32>
    %34 = vector.extract_strided_slice %11 {offsets = [0, 48], sizes = [16, 16], strides = [1, 1]} : vector<16x128xf32> to vector<16x16xf32>
    %35 = vector.shape_cast %34 : vector<16x16xf32> to vector<2x8x16xf32>
    %36 = vector.extract_strided_slice %11 {offsets = [0, 80], sizes = [16, 16], strides = [1, 1]} : vector<16x128xf32> to vector<16x16xf32>
    %37 = vector.shape_cast %36 : vector<16x16xf32> to vector<2x8x16xf32>
    "tpu.trace_start"() <{level = 10 : i32, message = "bqd,bkd->bqk"}> : () -> ()
    %cst_15 = arith.constant dense<0.000000e+00> : vector<2x8x8xf32>
    %38 = tpu.matmul %33, %35, %cst_15 {dimension_numbers = #tpu.dot_dimension_numbers<[2], [2], [1], [1], [0, 0, 0, 1, 1, 1], [0], [0]>} : vector<2x8x16xf32>, vector<2x8x16xf32>, vector<2x8x8xf32> -> vector<2x8x8xf32>
    "tpu.trace_stop"() : () -> ()
    %39 = arith.addf %38, %4 : vector<2x8x8xf32>
    %cst_16 = arith.constant dense<0xFF800000> : vector<2x8xf32>
    %40 = vector.multi_reduction <maximumf>, %39, %cst_16 [2] : vector<2x8x8xf32> to vector<2x8xf32>
    %41 = vector.shape_cast %40 : vector<2x8xf32> to vector<2x8x1xf32>
    %42 = vector.broadcast %41 : vector<2x8x1xf32> to vector<2x8x8xf32>
    %43 = arith.subf %39, %42 : vector<2x8x8xf32>
    %44 = math.exp %43 : vector<2x8x8xf32>
    %cst_17 = arith.constant dense<0.000000e+00> : vector<2x8xf32>
    %45 = vector.multi_reduction <add>, %44, %cst_17 [2] : vector<2x8x8xf32> to vector<2x8xf32>
    %46 = vector.shape_cast %45 : vector<2x8xf32> to vector<2x8x1xf32>
    %47 = tpu.reciprocal %46 {approx = true} : vector<2x8x1xf32> -> vector<2x8x1xf32>
    %48 = vector.broadcast %47 : vector<2x8x1xf32> to vector<2x8x8xf32>
    %49 = arith.mulf %44, %48 : vector<2x8x8xf32>
    "tpu.trace_start"() <{level = 10 : i32, message = "bqk,bkd->bqd"}> : () -> ()
    %cst_18 = arith.constant dense<0.000000e+00> : vector<2x8x16xf32>
    %50 = tpu.matmul %49, %37, %cst_18 {dimension_numbers = #tpu.dot_dimension_numbers<[2], [1], [1], [2], [0, 0, 0, 1, 1, 2], [0], [0]>} : vector<2x8x8xf32>, vector<2x8x16xf32>, vector<2x8x16xf32> -> vector<2x8x16xf32>
    "tpu.trace_stop"() : () -> ()
    %51 = vector.shape_cast %50 : vector<2x8x16xf32> to vector<16x16xf32>
    %52 = tpu.concatenate %31, %51 in 1 : vector<16x16xf32>, vector<16x16xf32> -> vector<16x32xf32>
    %c0_19 = arith.constant 0 : index
    %c0_20 = arith.constant 0 : index
    %c0_21 = arith.constant 0 : index
    %53 = vector.load %arg7[%c0_19, %c0_20, %c0_21] : memref<1x32x32xf32, #tpu.memory_space<vmem>>, vector<1x32x32xf32>
    %54 = vector.shape_cast %53 : vector<1x32x32xf32> to vector<32x32xf32>
    %cst_22 = arith.constant dense<0.000000e+00> : vector<16x32xf32>
    %55 = tpu.matmul %52, %54, %cst_22 {dimension_numbers = #tpu.dot_dimension_numbers<[1], [0], [0], [1], [0, 0, 1, 1], [], []>} : vector<16x32xf32>, vector<32x32xf32>, vector<16x32xf32> -> vector<16x32xf32>
    %c0_23 = arith.constant 0 : index
    %c0_24 = arith.constant 0 : index
    %c0_25 = arith.constant 0 : index
    %56 = vector.load %arg8[%c0_23, %c0_24, %c0_25] : memref<1x1x32xf32, #tpu.memory_space<vmem>>, vector<1x1x32xf32>
    %57 = vector.shape_cast %56 : vector<1x1x32xf32> to vector<1x32xf32>
    %58 = vector.broadcast %57 : vector<1x32xf32> to vector<16x32xf32>
    %59 = arith.addf %55, %58 : vector<16x32xf32>
    %60 = arith.addf %59, %3 : vector<16x32xf32>
    %c0_26 = arith.constant 0 : index
    %c0_27 = arith.constant 0 : index
    %c0_28 = arith.constant 0 : index
    %61 = vector.load %arg9[%c0_26, %c0_27, %c0_28] : memref<1x1x32xf32, #tpu.memory_space<vmem>>, vector<1x1x32xf32>
    %62 = vector.shape_cast %61 : vector<1x1x32xf32> to vector<1x32xf32>
    %c0_29 = arith.constant 0 : index
    %c0_30 = arith.constant 0 : index
    %c0_31 = arith.constant 0 : index
    %63 = vector.load %arg10[%c0_29, %c0_30, %c0_31] : memref<1x1x32xf32, #tpu.memory_space<vmem>>, vector<1x1x32xf32>
    %64 = vector.shape_cast %63 : vector<1x1x32xf32> to vector<1x32xf32>
    %cst_32 = arith.constant dense<0.000000e+00> : vector<16xf32>
    %65 = vector.multi_reduction <add>, %60, %cst_32 [1] : vector<16x32xf32> to vector<16xf32>
    %66 = vector.shape_cast %65 : vector<16xf32> to vector<16x1xf32>
    %cst_33 = arith.constant 3.200000e+01 : f32
    %67 = vector.broadcast %cst_33 : f32 to vector<16x1xf32>
    %68 = arith.divf %66, %67 : vector<16x1xf32>
    %69 = vector.broadcast %68 : vector<16x1xf32> to vector<16x32xf32>
    %70 = arith.subf %60, %69 : vector<16x32xf32>
    %71 = arith.mulf %70, %70 : vector<16x32xf32>
    %cst_34 = arith.constant dense<0.000000e+00> : vector<16xf32>
    %72 = vector.multi_reduction <add>, %71, %cst_34 [1] : vector<16x32xf32> to vector<16xf32>
    %73 = vector.shape_cast %72 : vector<16xf32> to vector<16x1xf32>
    %cst_35 = arith.constant 3.200000e+01 : f32
    %74 = vector.broadcast %cst_35 : f32 to vector<16x1xf32>
    %75 = arith.divf %73, %74 : vector<16x1xf32>
    %cst_36 = arith.constant 9.99999996E-13 : f32
    %76 = vector.broadcast %cst_36 : f32 to vector<16x1xf32>
    %77 = arith.addf %75, %76 : vector<16x1xf32>
    %78 = math.rsqrt %77 : vector<16x1xf32>
    %79 = vector.broadcast %78 : vector<16x1xf32> to vector<16x32xf32>
    %80 = arith.mulf %70, %79 : vector<16x32xf32>
    %81 = vector.broadcast %62 : vector<1x32xf32> to vector<16x32xf32>
    %82 = arith.mulf %80, %81 : vector<16x32xf32>
    %83 = vector.broadcast %64 : vector<1x32xf32> to vector<16x32xf32>
    %84 = arith.addf %82, %83 : vector<16x32xf32>
    %c0_37 = arith.constant 0 : index
    %c0_38 = arith.constant 0 : index
    %c0_39 = arith.constant 0 : index
    %85 = vector.load %arg11[%c0_37, %c0_38, %c0_39] : memref<1x32x64xf32, #tpu.memory_space<vmem>>, vector<1x32x64xf32>
    %86 = vector.shape_cast %85 : vector<1x32x64xf32> to vector<32x64xf32>
    %cst_40 = arith.constant dense<0.000000e+00> : vector<16x64xf32>
    %87 = tpu.matmul %84, %86, %cst_40 {dimension_numbers = #tpu.dot_dimension_numbers<[1], [0], [0], [1], [0, 0, 1, 1], [], []>} : vector<16x32xf32>, vector<32x64xf32>, vector<16x64xf32> -> vector<16x64xf32>
    %c0_41 = arith.constant 0 : index
    %c0_42 = arith.constant 0 : index
    %c0_43 = arith.constant 0 : index
    %88 = vector.load %arg12[%c0_41, %c0_42, %c0_43] : memref<1x1x64xf32, #tpu.memory_space<vmem>>, vector<1x1x64xf32>
    %89 = vector.shape_cast %88 : vector<1x1x64xf32> to vector<1x64xf32>
    %90 = vector.broadcast %89 : vector<1x64xf32> to vector<16x64xf32>
    %91 = arith.addf %87, %90 : vector<16x64xf32>
    %cst_44 = arith.constant 5.000000e-01 : f32
    %92 = vector.broadcast %cst_44 : f32 to vector<16x64xf32>
    %93 = arith.mulf %92, %91 : vector<16x64xf32>
    %cst_45 = arith.constant 0.707106769 : f32
    %94 = vector.broadcast %cst_45 : f32 to vector<16x64xf32>
    %95 = arith.mulf %91, %94 : vector<16x64xf32>
    %96 = math.erf %95 : vector<16x64xf32>
    %cst_46 = arith.constant 1.000000e+00 : f32
    %97 = vector.broadcast %cst_46 : f32 to vector<16x64xf32>
    %98 = arith.addf %97, %96 : vector<16x64xf32>
    %99 = arith.mulf %93, %98 : vector<16x64xf32>
    %c0_47 = arith.constant 0 : index
    %c0_48 = arith.constant 0 : index
    %c0_49 = arith.constant 0 : index
    %100 = vector.load %arg13[%c0_47, %c0_48, %c0_49] : memref<1x64x32xf32, #tpu.memory_space<vmem>>, vector<1x64x32xf32>
    %101 = vector.shape_cast %100 : vector<1x64x32xf32> to vector<64x32xf32>
    %cst_50 = arith.constant dense<0.000000e+00> : vector<16x32xf32>
    %102 = tpu.matmul %99, %101, %cst_50 {dimension_numbers = #tpu.dot_dimension_numbers<[1], [0], [0], [1], [0, 0, 1, 1], [], []>} : vector<16x64xf32>, vector<64x32xf32>, vector<16x32xf32> -> vector<16x32xf32>
    %c0_51 = arith.constant 0 : index
    %c0_52 = arith.constant 0 : index
    %c0_53 = arith.constant 0 : index
    %103 = vector.load %arg14[%c0_51, %c0_52, %c0_53] : memref<1x1x32xf32, #tpu.memory_space<vmem>>, vector<1x1x32xf32>
    %104 = vector.shape_cast %103 : vector<1x1x32xf32> to vector<1x32xf32>
    %105 = vector.broadcast %104 : vector<1x32xf32> to vector<16x32xf32>
    %106 = arith.addf %102, %105 : vector<16x32xf32>
    %107 = arith.addf %106, %84 : vector<16x32xf32>
    %c0_54 = arith.constant 0 : index
    %c0_55 = arith.constant 0 : index
    %c0_56 = arith.constant 0 : index
    %108 = vector.load %arg15[%c0_54, %c0_55, %c0_56] : memref<1x1x32xf32, #tpu.memory_space<vmem>>, vector<1x1x32xf32>
    %109 = vector.shape_cast %108 : vector<1x1x32xf32> to vector<1x32xf32>
    %c0_57 = arith.constant 0 : index
    %c0_58 = arith.constant 0 : index
    %c0_59 = arith.constant 0 : index
    %110 = vector.load %arg16[%c0_57, %c0_58, %c0_59] : memref<1x1x32xf32, #tpu.memory_space<vmem>>, vector<1x1x32xf32>
    %111 = vector.shape_cast %110 : vector<1x1x32xf32> to vector<1x32xf32>
    %cst_60 = arith.constant dense<0.000000e+00> : vector<16xf32>
    %112 = vector.multi_reduction <add>, %107, %cst_60 [1] : vector<16x32xf32> to vector<16xf32>
    %113 = vector.shape_cast %112 : vector<16xf32> to vector<16x1xf32>
    %cst_61 = arith.constant 3.200000e+01 : f32
    %114 = vector.broadcast %cst_61 : f32 to vector<16x1xf32>
    %115 = arith.divf %113, %114 : vector<16x1xf32>
    %116 = vector.broadcast %115 : vector<16x1xf32> to vector<16x32xf32>
    %117 = arith.subf %107, %116 : vector<16x32xf32>
    %118 = arith.mulf %117, %117 : vector<16x32xf32>
    %cst_62 = arith.constant dense<0.000000e+00> : vector<16xf32>
    %119 = vector.multi_reduction <add>, %118, %cst_62 [1] : vector<16x32xf32> to vector<16xf32>
    %120 = vector.shape_cast %119 : vector<16xf32> to vector<16x1xf32>
    %cst_63 = arith.constant 3.200000e+01 : f32
    %121 = vector.broadcast %cst_63 : f32 to vector<16x1xf32>
    %122 = arith.divf %120, %121 : vector<16x1xf32>
    %cst_64 = arith.constant 9.99999996E-13 : f32
    %123 = vector.broadcast %cst_64 : f32 to vector<16x1xf32>
    %124 = arith.addf %122, %123 : vector<16x1xf32>
    %125 = math.rsqrt %124 : vector<16x1xf32>
    %126 = vector.broadcast %125 : vector<16x1xf32> to vector<16x32xf32>
    %127 = arith.mulf %117, %126 : vector<16x32xf32>
    %128 = vector.broadcast %109 : vector<1x32xf32> to vector<16x32xf32>
    %129 = arith.mulf %127, %128 : vector<16x32xf32>
    %130 = vector.broadcast %111 : vector<1x32xf32> to vector<16x32xf32>
    %131 = arith.addf %129, %130 : vector<16x32xf32>
    %c0_65 = arith.constant 0 : index
    %c0_66 = arith.constant 0 : index
    %132 = vector.load %arg22[%c0_65, %c0_66] : memref<16x32xf32, #tpu.memory_space<vmem>>, vector<16x32xf32>
    tpu.vector_store %arg22[%c0_65, %c0_66], %131 {strides = array<i32>} : memref<16x32xf32, #tpu.memory_space<vmem>>, vector<16x32xf32>,
    %c1_i32 = arith.constant 1 : i32
    %133 = arith.cmpi eq, %arg0, %c1_i32 : i32
    %134 = arith.extui %133 : i1 to i32
    %c0_i32_67 = arith.constant 0 : i32
    %135 = arith.cmpi ne, %134, %c0_i32_67 : i32
    scf.if %135 {
      %136 = vector.shape_cast %131 : vector<16x32xf32> to vector<2x8x32xf32>
      %137 = vector.extract_strided_slice %136 {offsets = [0, 0, 0], sizes = [2, 1, 32], strides = [1, 1, 1]} : vector<2x8x32xf32> to vector<2x1x32xf32>
      %138 = vector.shape_cast %137 : vector<2x1x32xf32> to vector<2x32xf32>
      %c0_68 = arith.constant 0 : index
      %c0_69 = arith.constant 0 : index
      %139 = vector.load %arg17[%c0_68, %c0_69] : memref<32x128xf32, #tpu.memory_space<vmem>>, vector<32x128xf32>
      %cst_70 = arith.constant dense<0.000000e+00> : vector<2x128xf32>
      %140 = tpu.matmul %138, %139, %cst_70 {dimension_numbers = #tpu.dot_dimension_numbers<[1], [0], [0], [1], [0, 0, 1, 1], [], []>} : vector<2x32xf32>, vector<32x128xf32>, vector<2x128xf32> -> vector<2x128xf32>
      %c0_71 = arith.constant 0 : index
      %c0_72 = arith.constant 0 : index
      %141 = vector.load %arg18[%c0_71, %c0_72] : memref<1x128xf32, #tpu.memory_space<vmem>>, vector<1x128xf32>
      %142 = vector.broadcast %141 : vector<1x128xf32> to vector<2x128xf32>
      %143 = arith.addf %140, %142 : vector<2x128xf32>
      %c0_73 = arith.constant 0 : index
      %c0_74 = arith.constant 0 : index
      %144 = vector.load %arg20[%c0_73, %c0_74] : memref<2x128xf32, #tpu.memory_space<vmem>>, vector<2x128xf32>
      tpu.vector_store %arg20[%c0_73, %c0_74], %143 {strides = array<i32>} : memref<2x128xf32, #tpu.memory_space<vmem>>, vector<2x128xf32>,
      %145 = tpu.iota {dimensions = array<i32: 1>} : vector<2x128xi32>
      %c3_i32 = arith.constant 3 : i32
      %146 = vector.broadcast %c3_i32 : i32 to vector<2x128xi32>
      %147 = arith.cmpi slt, %145, %146 : vector<2x128xi32>
      %cst_75 = arith.constant -1.000000e+30 : f32
      %148 = vector.broadcast %cst_75 : f32 to vector<2x128xf32>
      %149 = arith.select %147, %143, %148 : vector<2x128xi1>, vector<2x128xf32>
      %cst_76 = arith.constant dense<0xFF800000> : vector<2xf32>
      %150 = vector.multi_reduction <maximumf>, %149, %cst_76 [1] : vector<2x128xf32> to vector<2xf32>
      %151 = vector.shape_cast %150 : vector<2xf32> to vector<2x1xf32>
      %152 = vector.broadcast %151 : vector<2x1xf32> to vector<2x128xf32>
      %153 = arith.subf %149, %152 : vector<2x128xf32>
      %154 = math.exp %153 : vector<2x128xf32>
      %cst_77 = arith.constant dense<0.000000e+00> : vector<2xf32>
      %155 = vector.multi_reduction <add>, %154, %cst_77 [1] : vector<2x128xf32> to vector<2xf32>
      %156 = vector.shape_cast %155 : vector<2xf32> to vector<2x1xf32>
      %157 = math.log %156 : vector<2x1xf32>
      %158 = arith.addf %151, %157 : vector<2x1xf32>
      %159 = vector.broadcast %158 : vector<2x1xf32> to vector<2x128xf32>
      %160 = arith.subf %149, %159 : vector<2x128xf32>
      %c0_78 = arith.constant 0 : index
      %c0_79 = arith.constant 0 : index
      %161 = vector.load %arg19[%c0_78, %c0_79] : memref<2x1xi32, #tpu.memory_space<vmem>>, vector<2x1xi32>
      %162 = vector.broadcast %161 : vector<2x1xi32> to vector<2x128xi32>
      %163 = arith.cmpi eq, %145, %162 : vector<2x128xi32>
      %cst_80 = arith.constant 0.000000e+00 : f32
      %164 = vector.broadcast %cst_80 : f32 to vector<2x128xf32>
      %165 = arith.select %163, %160, %164 : vector<2x128xi1>, vector<2x128xf32>
      %166 = vector.shape_cast %165 : vector<2x128xf32> to vector<1x2x128xf32>
      %cst_81 = arith.constant dense<0.000000e+00> : vector<1xf32>
      %167 = vector.multi_reduction <add>, %166, %cst_81 [1, 2] : vector<1x2x128xf32> to vector<1xf32>
      %168 = vector.shape_cast %167 : vector<1xf32> to vector<1x1x1xf32>
      %169 = vector.extract %168[0, 0, 0] : f32 from vector<1x1x1xf32>
      %cst_82 = arith.constant 0.000000e+00 : f32
      %170 = arith.subf %cst_82, %169 : f32
      %cst_83 = arith.constant 2.000000e+00 : f32
      %171 = arith.divf %170, %cst_83 : f32
      %c0_84 = arith.constant 0 : index
      %c0_85 = arith.constant 0 : index
      %172 = memref.load %arg21[%c0_84, %c0_85] : memref<1x1xf32, #tpu.memory_space<smem>>
      memref.store %171, %arg21[%c0_84, %c0_85] : memref<1x1xf32, #tpu.memory_space<smem>>
    } else {
    }
    return
  }
  func.func @transform_0(%arg0: i32) -> (i32, i32) {
    %c0_i32 = arith.constant 0 : i32
    %c0_i32_0 = arith.constant 0 : i32
    %c0_i32_1 = arith.constant 0 : i32
    return %c0_i32, %c0_i32_0 : i32, i32
  }
  func.func @transform_1(%arg0: i32) -> (i32, i32) {
    %c0_i32 = arith.constant 0 : i32
    %c0_i32_0 = arith.constant 0 : i32
    %c0_i32_1 = arith.constant 0 : i32
    return %c0_i32, %c0_i32_0 : i32, i32
  }
  func.func @transform_2(%arg0: i32) -> (i32, i32) {
    %c0_i32 = arith.constant 0 : i32
    %c0_i32_0 = arith.constant 0 : i32
    %c0_i32_1 = arith.constant 0 : i32
    return %c0_i32, %c0_i32_0 : i32, i32
  }
  func.func @transform_3(%arg0: i32) -> (i32, i32, i32) {
    %c0_i32 = arith.constant 0 : i32
    %c0_i32_0 = arith.constant 0 : i32
    %c0_i32_1 = arith.constant 0 : i32
    %c0_i32_2 = arith.constant 0 : i32
    return %c0_i32, %c0_i32_0, %c0_i32_1 : i32, i32, i32
  }
  func.func @transform_4(%arg0: i32) -> (i32, i32, i32) {
    %c0_i32 = arith.constant 0 : i32
    %c0_i32_0 = arith.constant 0 : i32
    %c0_i32_1 = arith.constant 0 : i32
    return %arg0, %c0_i32, %c0_i32_0 : i32, i32, i32
  }
  func.func @transform_5(%arg0: i32) -> (i32, i32, i32) {
    %c0_i32 = arith.constant 0 : i32
    %c0_i32_0 = arith.constant 0 : i32
    %c0_i32_1 = arith.constant 0 : i32
    return %arg0, %c0_i32, %c0_i32_0 : i32, i32, i32
  }
  func.func @transform_6(%arg0: i32) -> (i32, i32, i32) {
    %c0_i32 = arith.constant 0 : i32
    %c0_i32_0 = arith.constant 0 : i32
    %c0_i32_1 = arith.constant 0 : i32
    return %arg0, %c0_i32, %c0_i32_0 : i32, i32, i32
  }
  func.func @transform_7(%arg0: i32) -> (i32, i32, i32) {
    %c0_i32 = arith.constant 0 : i32
    %c0_i32_0 = arith.constant 0 : i32
    %c0_i32_1 = arith.constant 0 : i32
    return %arg0, %c0_i32, %c0_i32_0 : i32, i32, i32
  }
  func.func @transform_8(%arg0: i32) -> (i32, i32, i32) {
    %c0_i32 = arith.constant 0 : i32
    %c0_i32_0 = arith.constant 0 : i32
    %c0_i32_1 = arith.constant 0 : i32
    return %arg0, %c0_i32, %c0_i32_0 : i32, i32, i32
  }
  func.func @transform_9(%arg0: i32) -> (i32, i32, i32) {
    %c0_i32 = arith.constant 0 : i32
    %c0_i32_0 = arith.constant 0 : i32
    %c0_i32_1 = arith.constant 0 : i32
    return %arg0, %c0_i32, %c0_i32_0 : i32, i32, i32
  }
  func.func @transform_10(%arg0: i32) -> (i32, i32, i32) {
    %c0_i32 = arith.constant 0 : i32
    %c0_i32_0 = arith.constant 0 : i32
    %c0_i32_1 = arith.constant 0 : i32
    return %arg0, %c0_i32, %c0_i32_0 : i32, i32, i32
  }
  func.func @transform_11(%arg0: i32) -> (i32, i32, i32) {
    %c0_i32 = arith.constant 0 : i32
    %c0_i32_0 = arith.constant 0 : i32
    %c0_i32_1 = arith.constant 0 : i32
    return %arg0, %c0_i32, %c0_i32_0 : i32, i32, i32
  }
  func.func @transform_12(%arg0: i32) -> (i32, i32, i32) {
    %c0_i32 = arith.constant 0 : i32
    %c0_i32_0 = arith.constant 0 : i32
    %c0_i32_1 = arith.constant 0 : i32
    return %arg0, %c0_i32, %c0_i32_0 : i32, i32, i32
  }
  func.func @transform_13(%arg0: i32) -> (i32, i32, i32) {
    %c0_i32 = arith.constant 0 : i32
    %c0_i32_0 = arith.constant 0 : i32
    %c0_i32_1 = arith.constant 0 : i32
    return %arg0, %c0_i32, %c0_i32_0 : i32, i32, i32
  }
  func.func @transform_14(%arg0: i32) -> (i32, i32, i32) {
    %c0_i32 = arith.constant 0 : i32
    %c0_i32_0 = arith.constant 0 : i32
    %c0_i32_1 = arith.constant 0 : i32
    return %arg0, %c0_i32, %c0_i32_0 : i32, i32, i32
  }
  func.func @transform_15(%arg0: i32) -> (i32, i32, i32) {
    %c0_i32 = arith.constant 0 : i32
    %c0_i32_0 = arith.constant 0 : i32
    %c0_i32_1 = arith.constant 0 : i32
    return %arg0, %c0_i32, %c0_i32_0 : i32, i32, i32
  }
  func.func @transform_16(%arg0: i32) -> (i32, i32) {
    %c0_i32 = arith.constant 0 : i32
    %c0_i32_0 = arith.constant 0 : i32
    %c0_i32_1 = arith.constant 0 : i32
    return %c0_i32, %c0_i32_0 : i32, i32
  }
  func.func @transform_17(%arg0: i32) -> (i32, i32) {
    %c0_i32 = arith.constant 0 : i32
    %c0_i32_0 = arith.constant 0 : i32
    %c0_i32_1 = arith.constant 0 : i32
    return %c0_i32, %c0_i32_0 : i32, i32
  }
  func.func @transform_18(%arg0: i32) -> (i32, i32) {
    %c0_i32 = arith.constant 0 : i32
    %c0_i32_0 = arith.constant 0 : i32
    %c0_i32_1 = arith.constant 0 : i32
    return %c0_i32, %c0_i32_0 : i32, i32
  }
  func.func @transform_19(%arg0: i32) -> (i32, i32) {
    %c0_i32 = arith.constant 0 : i32
    %c0_i32_0 = arith.constant 0 : i32
    %c0_i32_1 = arith.constant 0 : i32
    return %c0_i32, %c0_i32_0 : i32, i32
  }
  func.func @transform_20(%arg0: i32) -> (i32, i32) {
    %c0_i32 = arith.constant 0 : i32
    %c0_i32_0 = arith.constant 0 : i32
    %c0_i32_1 = arith.constant 0 : i32
    return %c0_i32, %c0_i32_0 : i32, i32
  }
}

</mosaic_0001>

<llo_original>
// kernel: tpu_custom_call.1
$region0: #{tpu_custom_call.1}
  #allocation0 [shape = 'u32[]', space=smem, size = 0x4, offset = 0x4, fixed_abs, tag = 'smem constant byte address 0x4 - core index']
  #allocation1 [shape = 'u32[144,128]{1,0:T(1,128)}', space=vmem, size = 0x12000, scoped, tag = 'internal scratch']
  #allocation2 [shape = 'f32[16,32]{1,0:T(8,128)}', space=vmem, size = 0x2000, scoped, tag = 'scratch operand']
  %s0 = inlined_call_operand.hbm [shape: f32[16,32], index: 0, kind: input, shape index: {}]
  %s1 = inlined_call_operand.hbm [shape: f32[1,32], index: 1, kind: input, shape index: {}]
  %s2 = inlined_call_operand.hbm [shape: f32[1,32], index: 2, kind: input, shape index: {}]
  %s3 = inlined_call_operand.hbm [shape: f32[2,8,8], index: 3, kind: input, shape index: {}]
  %s4 = inlined_call_operand.vmem [shape: f32[2,32,128], index: 4, kind: input, shape index: {}]
  %s5 = inlined_call_operand.hbm [shape: f32[2,1,128], index: 5, kind: input, shape index: {}]
  %s6 = inlined_call_operand.vmem [shape: f32[2,32,32], index: 6, kind: input, shape index: {}]
  %s7 = inlined_call_operand.hbm [shape: f32[2,1,32], index: 7, kind: input, shape index: {}]
  %s8 = inlined_call_operand.hbm [shape: f32[2,1,32], index: 8, kind: input, shape index: {}]
  %s9 = inlined_call_operand.hbm [shape: f32[2,1,32], index: 9, kind: input, shape index: {}]
  %s10 = inlined_call_operand.vmem [shape: f32[2,32,64], index: 10, kind: input, shape index: {}]
  %s11 = inlined_call_operand.hbm [shape: f32[2,1,64], index: 11, kind: input, shape index: {}]
  %s12 = inlined_call_operand.vmem [shape: f32[2,64,32], index: 12, kind: input, shape index: {}]
  %s13 = inlined_call_operand.hbm [shape: f32[2,1,32], index: 13, kind: input, shape index: {}]
  %s14 = inlined_call_operand.hbm [shape: f32[2,1,32], index: 14, kind: input, shape index: {}]
  %s15 = inlined_call_operand.hbm [shape: f32[2,1,32], index: 15, kind: input, shape index: {}]
  %s16 = inlined_call_operand.vmem [shape: f32[32,128], index: 16, kind: input, shape index: {}]
  %s17 = inlined_call_operand.hbm [shape: f32[1,128], index: 17, kind: input, shape index: {}]
  %s18 = inlined_call_operand.vmem [shape: s32[2,1], index: 18, kind: input, shape index: {}]
  %s19 = inlined_call_operand.hbm [shape: f32[2,128], index: 19, kind: output, shape index: {0}]
  %s20 = inlined_call_operand.hbm [shape: f32[1,1], index: 20, kind: output, shape index: {1}]
  %21 = xla_tuple %s19, %s20
  %s22 = sld [smem:[#allocation0]]
  $region177: #{tpu_custom_call.1} parent=0
    _
  %s24 = ssub.s32 1, %s22
  %s25 = scalar_select 0, %s24, %s22
  $region1: #{tpu_custom_call.1} parent=0
    #allocation3 [shape = 'u8[8192]{0}', space=vmem, size = 0x2000, scoped, tag = 'input window, operand 0, single buffered']
    #allocation4 [shape = 's32[2]{0}', space=sflag, size = 0x8, scoped, tag = 'scoped memory for tpu_custom_call.1']
    #allocation5 [shape = 's32[2]{0}', space=sflag, size = 0x8, scoped, tag = 'scoped memory for tpu_custom_call.1']
    #allocation6 [shape = 's32[2]{0}', space=sflag, size = 0x8, scoped, tag = 'scoped memory for tpu_custom_call.1']
    #allocation7 [shape = 'u8[512]{0}', space=vmem, size = 0x400, scoped, tag = 'input window, operand 1, single buffered']
    #allocation8 [shape = 's32[1]{0}', space=sflag, size = 0x4, scoped, tag = 'scoped memory for tpu_custom_call.1']
    #allocation9 [shape = 'u8[512]{0}', space=vmem, size = 0x400, scoped, tag = 'input window, operand 2, single buffered']
    #allocation10 [shape = 'u8[8192]{0}', space=vmem, size = 0x2000, scoped, tag = 'input window, operand 3, single buffered']
    #allocation11 [shape = 's32[1]{0}', space=sflag, size = 0x4, scoped, tag = 'scoped memory for tpu_custom_call.1']
    #allocation12 [shape = 'u8[1024]{0}', space=vmem, size = 0x400, scoped, tag = 'input window, operand 5']
    #allocation13 [shape = 'u8[1024]{0}', space=vmem, size = 0x400, scoped, tag = 'input window, operand 7']
    #allocation14 [shape = 'u8[1024]{0}', space=vmem, size = 0x400, scoped, tag = 'input window, operand 8']
    #allocation15 [shape = 'u8[1024]{0}', space=vmem, size = 0x400, scoped, tag = 'input window, operand 9']
    #allocation16 [shape = 'u8[1024]{0}', space=vmem, size = 0x400, scoped, tag = 'input window, operand 11']
    #allocation17 [shape = 'u8[1024]{0}', space=vmem, size = 0x400, scoped, tag = 'input window, operand 13']
    #allocation18 [shape = 'u8[1024]{0}', space=vmem, size = 0x400, scoped, tag = 'input window, operand 14']
    #allocation19 [shape = 'u8[1024]{0}', space=vmem, size = 0x400, scoped, tag = 'input window, operand 15']
    #allocation20 [shape = 'u8[512]{0}', space=vmem, size = 0x400, scoped, tag = 'input window, operand 17, single buffered']
    #allocation21 [shape = 'u8[1024]{0}', space=vmem, size = 0x400, scoped, tag = 'output window, operand 0, single buffered']
    #allocation22 [shape = 'u8[512]{0}', space=smem, size = 0x200, scoped, tag = 'output window, operand 1, single buffered']
    %26 = vsyncpa [#allocation4], 0
    %27 = vsyncpa [#allocation8], 0
    %28 = vsyncpa [#allocation11], 0
    %29 = vsyncpa [#allocation5], 0
    %30 = vsyncpa [#allocation6], 0
    loop: start=0, step=1, limit=4
    $region2: #{tpu_custom_call.1} parent=1 // loop_pre_header
      _
    $region3: #{tpu_custom_call.1} parent=1 // loop_header
      %s32 = sphi 0, %s36
      %p33 = scmp.ge.s32.totalorder %s32, 4
      %s40 = sphi 0, %s40
      %s42 = sphi 0, %s40
      %s43 = sphi 0, %s42
      %s57 = sphi 0, %s43
      %s61 = sphi 0, %s61
      %s63 = sphi 0, %s61
      %s64 = sphi 0, %s63
      %s78 = sphi 0, %s64
      %s82 = sphi 0, %s82
      %s84 = sphi 0, %s82
      %s85 = sphi 0, %s84
      %s99 = sphi 0, %s85
      %s103 = sphi 0, %s103
      %s105 = sphi 0, %s103
      %s106 = sphi 0, %s105
      %s120 = sphi 0, %s106
      %s126 = sphi 0, %s128
      %s129 = sphi 0, %s126
      %s130 = sphi 0, %s129
      %s146 = sphi 0, %s130
      %s152 = sphi 0, %s154
      %s155 = sphi 0, %s152
      %s156 = sphi 0, %s155
      %s172 = sphi 0, %s156
      %s178 = sphi 0, %s180
      %s181 = sphi 0, %s178
      %s182 = sphi 0, %s181
      %s198 = sphi 0, %s182
      %s204 = sphi 0, %s206
      %s207 = sphi 0, %s204
      %s208 = sphi 0, %s207
      %s224 = sphi 0, %s208
      %s230 = sphi 0, %s232
      %s233 = sphi 0, %s230
      %s234 = sphi 0, %s233
      %s250 = sphi 0, %s234
      %s256 = sphi 0, %s258
      %s259 = sphi 0, %s256
      %s260 = sphi 0, %s259
      %s276 = sphi 0, %s260
      %s282 = sphi 0, %s284
      %s285 = sphi 0, %s282
      %s286 = sphi 0, %s285
      %s302 = sphi 0, %s286
      %s308 = sphi 0, %s310
      %s311 = sphi 0, %s308
      %s312 = sphi 0, %s311
      %s328 = sphi 0, %s312
      %s334 = sphi 0, %s336
      %s337 = sphi 0, %s334
      %s338 = sphi 0, %s337
      %s354 = sphi 0, %s338
      %s360 = sphi 0, %s362
      %s363 = sphi 0, %s360
      %s364 = sphi 0, %s363
      %s380 = sphi 0, %s364
      %s386 = sphi 0, %s388
      %s389 = sphi 0, %s386
      %s390 = sphi 0, %s389
      %s406 = sphi 0, %s390
      %s412 = sphi 0, %s414
      %s415 = sphi 0, %s412
      %s416 = sphi 0, %s415
      %s432 = sphi 0, %s416
      %s436 = sphi 0, %s436
      %s438 = sphi 0, %s436
      %s439 = sphi 0, %s438
      %s453 = sphi 0, %s439
      %s457 = sphi 0, %s457
      %s459 = sphi 0, %s457
      %s460 = sphi 0, %s459
      %s474 = sphi 0, %s460
      %s478 = sphi 0, %s478
      %s480 = sphi 0, %s478
      %s481 = sphi 0, %s480
      %s495 = sphi 0, %s481
      %s499 = sphi 0, %s499
      %s501 = sphi 0, %s499
      %s502 = sphi 0, %s501
      %s516 = sphi 0, %s502
      %s520 = sphi 0, %s520
      %s522 = sphi 0, %s520
      %s523 = sphi 0, %s522
      %s537 = sphi 0, %s523
    $region4: #{tpu_custom_call.1} parent=1 // loop_header_branch
      %35 = sbr.rel (%p33) target = $region8
    $region5: #{tpu_custom_call.1} parent=1 // loop_body
      %s37 = ssub.s32 %s32, 1
      %s38 = ssub.s32 %s32, 2
      %s39 = sadd.s32 %s32, 1
      %s41 = sadd.s32 %s40, 1
      %p44 = scmp.eq.s32.totalorder %s32, 1
      %p45 = scmp.ne.s32.totalorder %s40, %s42
      %p46 = scmp.eq.s32.totalorder %s32, 0
      %p47 = por %p45, %p46
      %p48 = scmp.ne.s32.totalorder %s40, %s42
      %p49 = scmp.eq.s32.totalorder %s37, 1
      %p50 = por %p48, %p49
      %p51 = scmp.ne.s32.totalorder %s42, %s43
      %p52 = scmp.eq.s32.totalorder %s37, 0
      %p53 = por %p51, %p52
      %p54 = scmp.ne.s32.totalorder %s42, %s43
      %p55 = scmp.eq.s32.totalorder %s38, 1
      %p56 = por %p54, %p55
      %p58 = scmp.ne.s32.totalorder %s43, %s57
      %p59 = scmp.eq.s32.totalorder %s38, 0
      %p60 = por %p58, %p59
      %s62 = sadd.s32 %s61, 1
      %p65 = scmp.eq.s32.totalorder %s32, 1
      %p66 = scmp.ne.s32.totalorder %s61, %s63
      %p67 = scmp.eq.s32.totalorder %s32, 0
      %p68 = por %p66, %p67
      %p69 = scmp.ne.s32.totalorder %s61, %s63
      %p70 = scmp.eq.s32.totalorder %s37, 1
      %p71 = por %p69, %p70
      %p72 = scmp.ne.s32.totalorder %s63, %s64
      %p73 = scmp.eq.s32.totalorder %s37, 0
      %p74 = por %p72, %p73
      %p75 = scmp.ne.s32.totalorder %s63, %s64
      %p76 = scmp.eq.s32.totalorder %s38, 1
      %p77 = por %p75, %p76
      %p79 = scmp.ne.s32.totalorder %s64, %s78
      %p80 = scmp.eq.s32.totalorder %s38, 0
      %p81 = por %p79, %p80
      %s83 = sadd.s32 %s82, 1
      %p86 = scmp.eq.s32.totalorder %s32, 1
      %p87 = scmp.ne.s32.totalorder %s82, %s84
      %p88 = scmp.eq.s32.totalorder %s32, 0
      %p89 = por %p87, %p88
      %p90 = scmp.ne.s32.totalorder %s82, %s84
      %p91 = scmp.eq.s32.totalorder %s37, 1
      %p92 = por %p90, %p91
      %p93 = scmp.ne.s32.totalorder %s84, %s85
      %p94 = scmp.eq.s32.totalorder %s37, 0
      %p95 = por %p93, %p94
      %p96 = scmp.ne.s32.totalorder %s84, %s85
      %p97 = scmp.eq.s32.totalorder %s38, 1
      %p98 = por %p96, %p97
      %p100 = scmp.ne.s32.totalorder %s85, %s99
      %p101 = scmp.eq.s32.totalorder %s38, 0
      %p102 = por %p100, %p101
      %s104 = sadd.s32 %s103, 1
      %p107 = scmp.eq.s32.totalorder %s32, 1
      %p108 = scmp.ne.s32.totalorder %s103, %s105
      %p109 = scmp.eq.s32.totalorder %s32, 0
      %p110 = por %p108, %p109
      %p111 = scmp.ne.s32.totalorder %s103, %s105
      %p112 = scmp.eq.s32.totalorder %s37, 1
      %p113 = por %p111, %p112
      %p114 = scmp.ne.s32.totalorder %s105, %s106
      %p115 = scmp.eq.s32.totalorder %s37, 0
      %p116 = por %p114, %p115
      %p117 = scmp.ne.s32.totalorder %s105, %s106
      %p118 = scmp.eq.s32.totalorder %s38, 1
      %p119 = por %p117, %p118
      %p121 = scmp.ne.s32.totalorder %s106, %s120
      %p122 = scmp.eq.s32.totalorder %s38, 0
      %p123 = por %p121, %p122
      %s124 = ssub.s32 %s32, %s39
      %p125 = scmp.eq.s32.totalorder %s124, 0
      %s127 = sadd.s32 %s126, 1
      %s128 = scalar_select %p125, %s126, %s127
      %p131 = pneg %p125
      %p132 = scmp.eq.s32.totalorder %s32, 1
      %p133 = por %p131, %p132
      %p134 = scmp.ne.s32.totalorder %s126, %s129
      %p135 = scmp.eq.s32.totalorder %s32, 0
      %p136 = por %p134, %p135
      %p137 = scmp.ne.s32.totalorder %s126, %s129
      %p138 = scmp.eq.s32.totalorder %s37, 1
      %p139 = por %p137, %p138
      %p140 = scmp.ne.s32.totalorder %s129, %s130
      %p141 = scmp.eq.s32.totalorder %s37, 0
      %p142 = por %p140, %p141
      %p143 = scmp.ne.s32.totalorder %s129, %s130
      %p144 = scmp.eq.s32.totalorder %s38, 1
      %p145 = por %p143, %p144
      %p147 = scmp.ne.s32.totalorder %s130, %s146
      %p148 = scmp.eq.s32.totalorder %s38, 0
      %p149 = por %p147, %p148
      %s150 = ssub.s32 %s32, %s39
      %p151 = scmp.eq.s32.totalorder %s150, 0
      %s153 = sadd.s32 %s152, 1
      %s154 = scalar_select %p151, %s152, %s153
      %p157 = pneg %p151
      %p158 = scmp.eq.s32.totalorder %s32, 1
      %p159 = por %p157, %p158
      %p160 = scmp.ne.s32.totalorder %s152, %s155
      %p161 = scmp.eq.s32.totalorder %s32, 0
      %p162 = por %p160, %p161
      %p163 = scmp.ne.s32.totalorder %s152, %s155
      %p164 = scmp.eq.s32.totalorder %s37, 1
      %p165 = por %p163, %p164
      %p166 = scmp.ne.s32.totalorder %s155, %s156
      %p167 = scmp.eq.s32.totalorder %s37, 0
      %p168 = por %p166, %p167
      %p169 = scmp.ne.s32.totalorder %s155, %s156
      %p170 = scmp.eq.s32.totalorder %s38, 1
      %p171 = por %p169, %p170
      %p173 = scmp.ne.s32.totalorder %s156, %s172
      %p174 = scmp.eq.s32.totalorder %s38, 0
      %p175 = por %p173, %p174
      %s176 = ssub.s32 %s32, %s39
      %p177 = scmp.eq.s32.totalorder %s176, 0
      %s179 = sadd.s32 %s178, 1
      %s180 = scalar_select %p177, %s178, %s179
      %p183 = pneg %p177
      %p184 = scmp.eq.s32.totalorder %s32, 1
      %p185 = por %p183, %p184
      %p186 = scmp.ne.s32.totalorder %s178, %s181
      %p187 = scmp.eq.s32.totalorder %s32, 0
      %p188 = por %p186, %p187
      %p189 = scmp.ne.s32.totalorder %s178, %s181
      %p190 = scmp.eq.s32.totalorder %s37, 1
      %p191 = por %p189, %p190
      %p192 = scmp.ne.s32.totalorder %s181, %s182
      %p193 = scmp.eq.s32.totalorder %s37, 0
      %p194 = por %p192, %p193
      %p195 = scmp.ne.s32.totalorder %s181, %s182
      %p196 = scmp.eq.s32.totalorder %s38, 1
      %p197 = por %p195, %p196
      %p199 = scmp.ne.s32.totalorder %s182, %s198
      %p200 = scmp.eq.s32.totalorder %s38, 0
      %p201 = por %p199, %p200
      %s202 = ssub.s32 %s32, %s39
      %p203 = scmp.eq.s32.totalorder %s202, 0
      %s205 = sadd.s32 %s204, 1
      %s206 = scalar_select %p203, %s204, %s205
      %p209 = pneg %p203
      %p210 = scmp.eq.s32.totalorder %s32, 1
      %p211 = por %p209, %p210
      %p212 = scmp.ne.s32.totalorder %s204, %s207
      %p213 = scmp.eq.s32.totalorder %s32, 0
      %p214 = por %p212, %p213
      %p215 = scmp.ne.s32.totalorder %s204, %s207
      %p216 = scmp.eq.s32.totalorder %s37, 1
      %p217 = por %p215, %p216
      %p218 = scmp.ne.s32.totalorder %s207, %s208
      %p219 = scmp.eq.s32.totalorder %s37, 0
      %p220 = por %p218, %p219
      %p221 = scmp.ne.s32.totalorder %s207, %s208
      %p222 = scmp.eq.s32.totalorder %s38, 1
      %p223 = por %p221, %p222
      %p225 = scmp.ne.s32.totalorder %s208, %s224
      %p226 = scmp.eq.s32.totalorder %s38, 0
      %p227 = por %p225, %p226
      %s228 = ssub.s32 %s32, %s39
      %p229 = scmp.eq.s32.totalorder %s228, 0
      %s231 = sadd.s32 %s230, 1
      %s232 = scalar_select %p229, %s230, %s231
      %p235 = pneg %p229
      %p236 = scmp.eq.s32.totalorder %s32, 1
      %p237 = por %p235, %p236
      %p238 = scmp.ne.s32.totalorder %s230, %s233
      %p239 = scmp.eq.s32.totalorder %s32, 0
      %p240 = por %p238, %p239
      %p241 = scmp.ne.s32.totalorder %s230, %s233
      %p242 = scmp.eq.s32.totalorder %s37, 1
      %p243 = por %p241, %p242
      %p244 = scmp.ne.s32.totalorder %s233, %s234
      %p245 = scmp.eq.s32.totalorder %s37, 0
      %p246 = por %p244, %p245
      %p247 = scmp.ne.s32.totalorder %s233, %s234
      %p248 = scmp.eq.s32.totalorder %s38, 1
      %p249 = por %p247, %p248
      %p251 = scmp.ne.s32.totalorder %s234, %s250
      %p252 = scmp.eq.s32.totalorder %s38, 0
      %p253 = por %p251, %p252
      %s254 = ssub.s32 %s32, %s39
      %p255 = scmp.eq.s32.totalorder %s254, 0
      %s257 = sadd.s32 %s256, 1
      %s258 = scalar_select %p255, %s256, %s257
      %p261 = pneg %p255
      %p262 = scmp.eq.s32.totalorder %s32, 1
      %p263 = por %p261, %p262
      %p264 = scmp.ne.s32.totalorder %s256, %s259
      %p265 = scmp.eq.s32.totalorder %s32, 0
      %p266 = por %p264, %p265
      %p267 = scmp.ne.s32.totalorder %s256, %s259
      %p268 = scmp.eq.s32.totalorder %s37, 1
      %p269 = por %p267, %p268
      %p270 = scmp.ne.s32.totalorder %s259, %s260
      %p271 = scmp.eq.s32.totalorder %s37, 0
      %p272 = por %p270, %p271
      %p273 = scmp.ne.s32.totalorder %s259, %s260
      %p274 = scmp.eq.s32.totalorder %s38, 1
      %p275 = por %p273, %p274
      %p277 = scmp.ne.s32.totalorder %s260, %s276
      %p278 = scmp.eq.s32.totalorder %s38, 0
      %p279 = por %p277, %p278
      %s280 = ssub.s32 %s32, %s39
      %p281 = scmp.eq.s32.totalorder %s280, 0
      %s283 = sadd.s32 %s282, 1
      %s284 = scalar_select %p281, %s282, %s283
      %p287 = pneg %p281
      %p288 = scmp.eq.s32.totalorder %s32, 1
      %p289 = por %p287, %p288
      %p290 = scmp.ne.s32.totalorder %s282, %s285
      %p291 = scmp.eq.s32.totalorder %s32, 0
      %p292 = por %p290, %p291
      %p293 = scmp.ne.s32.totalorder %s282, %s285
      %p294 = scmp.eq.s32.totalorder %s37, 1
      %p295 = por %p293, %p294
      %p296 = scmp.ne.s32.totalorder %s285, %s286
      %p297 = scmp.eq.s32.totalorder %s37, 0
      %p298 = por %p296, %p297
      %p299 = scmp.ne.s32.totalorder %s285, %s286
      %p300 = scmp.eq.s32.totalorder %s38, 1
      %p301 = por %p299, %p300
      %p303 = scmp.ne.s32.totalorder %s286, %s302
      %p304 = scmp.eq.s32.totalorder %s38, 0
      %p305 = por %p303, %p304
      %s306 = ssub.s32 %s32, %s39
      %p307 = scmp.eq.s32.totalorder %s306, 0
      %s309 = sadd.s32 %s308, 1
      %s310 = scalar_select %p307, %s308, %s309
      %p313 = pneg %p307
      %p314 = scmp.eq.s32.totalorder %s32, 1
      %p315 = por %p313, %p314
      %p316 = scmp.ne.s32.totalorder %s308, %s311
      %p317 = scmp.eq.s32.totalorder %s32, 0
      %p318 = por %p316, %p317
      %p319 = scmp.ne.s32.totalorder %s308, %s311
      %p320 = scmp.eq.s32.totalorder %s37, 1
      %p321 = por %p319, %p320
      %p322 = scmp.ne.s32.totalorder %s311, %s312
      %p323 = scmp.eq.s32.totalorder %s37, 0
      %p324 = por %p322, %p323
      %p325 = scmp.ne.s32.totalorder %s311, %s312
      %p326 = scmp.eq.s32.totalorder %s38, 1
      %p327 = por %p325, %p326
      %p329 = scmp.ne.s32.totalorder %s312, %s328
      %p330 = scmp.eq.s32.totalorder %s38, 0
      %p331 = por %p329, %p330
      %s332 = ssub.s32 %s32, %s39
      %p333 = scmp.eq.s32.totalorder %s332, 0
      %s335 = sadd.s32 %s334, 1
      %s336 = scalar_select %p333, %s334, %s335
      %p339 = pneg %p333
      %p340 = scmp.eq.s32.totalorder %s32, 1
      %p341 = por %p339, %p340
      %p342 = scmp.ne.s32.totalorder %s334, %s337
      %p343 = scmp.eq.s32.totalorder %s32, 0
      %p344 = por %p342, %p343
      %p345 = scmp.ne.s32.totalorder %s334, %s337
      %p346 = scmp.eq.s32.totalorder %s37, 1
      %p347 = por %p345, %p346
      %p348 = scmp.ne.s32.totalorder %s337, %s338
      %p349 = scmp.eq.s32.totalorder %s37, 0
      %p350 = por %p348, %p349
      %p351 = scmp.ne.s32.totalorder %s337, %s338
      %p352 = scmp.eq.s32.totalorder %s38, 1
      %p353 = por %p351, %p352
      %p355 = scmp.ne.s32.totalorder %s338, %s354
      %p356 = scmp.eq.s32.totalorder %s38, 0
      %p357 = por %p355, %p356
      %s358 = ssub.s32 %s32, %s39
      %p359 = scmp.eq.s32.totalorder %s358, 0
      %s361 = sadd.s32 %s360, 1
      %s362 = scalar_select %p359, %s360, %s361
      %p365 = pneg %p359
      %p366 = scmp.eq.s32.totalorder %s32, 1
      %p367 = por %p365, %p366
      %p368 = scmp.ne.s32.totalorder %s360, %s363
      %p369 = scmp.eq.s32.totalorder %s32, 0
      %p370 = por %p368, %p369
      %p371 = scmp.ne.s32.totalorder %s360, %s363
      %p372 = scmp.eq.s32.totalorder %s37, 1
      %p373 = por %p371, %p372
      %p374 = scmp.ne.s32.totalorder %s363, %s364
      %p375 = scmp.eq.s32.totalorder %s37, 0
      %p376 = por %p374, %p375
      %p377 = scmp.ne.s32.totalorder %s363, %s364
      %p378 = scmp.eq.s32.totalorder %s38, 1
      %p379 = por %p377, %p378
      %p381 = scmp.ne.s32.totalorder %s364, %s380
      %p382 = scmp.eq.s32.totalorder %s38, 0
      %p383 = por %p381, %p382
      %s384 = ssub.s32 %s32, %s39
      %p385 = scmp.eq.s32.totalorder %s384, 0
      %s387 = sadd.s32 %s386, 1
      %s388 = scalar_select %p385, %s386, %s387
      %p391 = pneg %p385
      %p392 = scmp.eq.s32.totalorder %s32, 1
      %p393 = por %p391, %p392
      %p394 = scmp.ne.s32.totalorder %s386, %s389
      %p395 = scmp.eq.s32.totalorder %s32, 0
      %p396 = por %p394, %p395
      %p397 = scmp.ne.s32.totalorder %s386, %s389
      %p398 = scmp.eq.s32.totalorder %s37, 1
      %p399 = por %p397, %p398
      %p400 = scmp.ne.s32.totalorder %s389, %s390
      %p401 = scmp.eq.s32.totalorder %s37, 0
      %p402 = por %p400, %p401
      %p403 = scmp.ne.s32.totalorder %s389, %s390
      %p404 = scmp.eq.s32.totalorder %s38, 1
      %p405 = por %p403, %p404
      %p407 = scmp.ne.s32.totalorder %s390, %s406
      %p408 = scmp.eq.s32.totalorder %s38, 0
      %p409 = por %p407, %p408
      %s410 = ssub.s32 %s32, %s39
      %p411 = scmp.eq.s32.totalorder %s410, 0
      %s413 = sadd.s32 %s412, 1
      %s414 = scalar_select %p411, %s412, %s413
      %p417 = pneg %p411
      %p418 = scmp.eq.s32.totalorder %s32, 1
      %p419 = por %p417, %p418
      %p420 = scmp.ne.s32.totalorder %s412, %s415
      %p421 = scmp.eq.s32.totalorder %s32, 0
      %p422 = por %p420, %p421
      %p423 = scmp.ne.s32.totalorder %s412, %s415
      %p424 = scmp.eq.s32.totalorder %s37, 1
      %p425 = por %p423, %p424
      %p426 = scmp.ne.s32.totalorder %s415, %s416
      %p427 = scmp.eq.s32.totalorder %s37, 0
      %p428 = por %p426, %p427
      %p429 = scmp.ne.s32.totalorder %s415, %s416
      %p430 = scmp.eq.s32.totalorder %s38, 1
      %p431 = por %p429, %p430
      %p433 = scmp.ne.s32.totalorder %s416, %s432
      %p434 = scmp.eq.s32.totalorder %s38, 0
      %p435 = por %p433, %p434
      %s437 = sadd.s32 %s436, 1
      %p440 = scmp.eq.s32.totalorder %s32, 1
      %p441 = scmp.ne.s32.totalorder %s436, %s438
      %p442 = scmp.eq.s32.totalorder %s32, 0
      %p443 = por %p441, %p442
      %p444 = scmp.ne.s32.totalorder %s436, %s438
      %p445 = scmp.eq.s32.totalorder %s37, 1
      %p446 = por %p444, %p445
      %p447 = scmp.ne.s32.totalorder %s438, %s439
      %p448 = scmp.eq.s32.totalorder %s37, 0
      %p449 = por %p447, %p448
      %p450 = scmp.ne.s32.totalorder %s438, %s439
      %p451 = scmp.eq.s32.totalorder %s38, 1
      %p452 = por %p450, %p451
      %p454 = scmp.ne.s32.totalorder %s439, %s453
      %p455 = scmp.eq.s32.totalorder %s38, 0
      %p456 = por %p454, %p455
      %s458 = sadd.s32 %s457, 1
      %p461 = scmp.eq.s32.totalorder %s32, 1
      %p462 = scmp.ne.s32.totalorder %s457, %s459
      %p463 = scmp.eq.s32.totalorder %s32, 0
      %p464 = por %p462, %p463
      %p465 = scmp.ne.s32.totalorder %s457, %s459
      %p466 = scmp.eq.s32.totalorder %s37, 1
      %p467 = por %p465, %p466
      %p468 = scmp.ne.s32.totalorder %s459, %s460
      %p469 = scmp.eq.s32.totalorder %s37, 0
      %p470 = por %p468, %p469
      %p471 = scmp.ne.s32.totalorder %s459, %s460
      %p472 = scmp.eq.s32.totalorder %s38, 1
      %p473 = por %p471, %p472
      %p475 = scmp.ne.s32.totalorder %s460, %s474
      %p476 = scmp.eq.s32.totalorder %s38, 0
      %p477 = por %p475, %p476
      %s479 = sadd.s32 %s478, 1
      %p482 = scmp.eq.s32.totalorder %s32, 1
      %p483 = scmp.ne.s32.totalorder %s478, %s480
      %p484 = scmp.eq.s32.totalorder %s32, 0
      %p485 = por %p483, %p484
      %p486 = scmp.ne.s32.totalorder %s478, %s480
      %p487 = scmp.eq.s32.totalorder %s37, 1
      %p488 = por %p486, %p487
      %p489 = scmp.ne.s32.totalorder %s480, %s481
      %p490 = scmp.eq.s32.totalorder %s37, 0
      %p491 = por %p489, %p490
      %p492 = scmp.ne.s32.totalorder %s480, %s481
      %p493 = scmp.eq.s32.totalorder %s38, 1
      %p494 = por %p492, %p493
      %p496 = scmp.ne.s32.totalorder %s481, %s495
      %p497 = scmp.eq.s32.totalorder %s38, 0
      %p498 = por %p496, %p497
      %s500 = sadd.s32 %s499, 1
      %p503 = scmp.eq.s32.totalorder %s32, 1
      %p504 = scmp.ne.s32.totalorder %s499, %s501
      %p505 = scmp.eq.s32.totalorder %s32, 0
      %p506 = por %p504, %p505
      %p507 = scmp.ne.s32.totalorder %s499, %s501
      %p508 = scmp.eq.s32.totalorder %s37, 1
      %p509 = por %p507, %p508
      %p510 = scmp.ne.s32.totalorder %s501, %s502
      %p511 = scmp.eq.s32.totalorder %s37, 0
      %p512 = por %p510, %p511
      %p513 = scmp.ne.s32.totalorder %s501, %s502
      %p514 = scmp.eq.s32.totalorder %s38, 1
      %p515 = por %p513, %p514
      %p517 = scmp.ne.s32.totalorder %s502, %s516
      %p518 = scmp.eq.s32.totalorder %s38, 0
      %p519 = por %p517, %p518
      %s521 = sadd.s32 %s520, 1
      %p524 = scmp.eq.s32.totalorder %s32, 1
      %p525 = scmp.ne.s32.totalorder %s520, %s522
      %p526 = scmp.eq.s32.totalorder %s32, 0
      %p527 = por %p525, %p526
      %p528 = scmp.ne.s32.totalorder %s520, %s522
      %p529 = scmp.eq.s32.totalorder %s37, 1
      %p530 = por %p528, %p529
      %p531 = scmp.ne.s32.totalorder %s522, %s523
      %p532 = scmp.eq.s32.totalorder %s37, 0
      %p533 = por %p531, %p532
      %p534 = scmp.ne.s32.totalorder %s522, %s523
      %p535 = scmp.eq.s32.totalorder %s38, 1
      %p536 = por %p534, %p535
      %p538 = scmp.ne.s32.totalorder %s523, %s537
      %p539 = scmp.eq.s32.totalorder %s38, 0
      %p540 = por %p538, %p539
      %p541 = scmp.le.s32.totalorder 1, %s32
      %p542 = scmp.lt.s32.totalorder %s32, 3
      %p543 = pnand %p541, %p542
      %p544 = pneg %p543
      // Predicated region
      $region9: #{tpu_custom_call.1} parent=5 // pred_check
        _
      $region10: #{tpu_custom_call.1} parent=5 // pred_check_branch
        %546 = sbr.rel (%p543) target = $region12
      $region11: #{tpu_custom_call.1} parent=5 // pred_region
        %s547 = ssub.s32 %s32, 1
        // Predicated region
        $region13: #{tpu_custom_call.1} parent=11 // pred_check
          %p548 = pneg %p53
        $region14: #{tpu_custom_call.1} parent=11 // pred_check_branch
          %550 = sbr.rel (%p548) target = $region16
        $region15: #{tpu_custom_call.1} parent=11 // pred_region
          %s552 = ssub.s32 256, 256
          %553 = vsyncadd [#allocation4], %s552
          %s554 = sshll.u32 [#allocation3], 4
          %s555 = int_to_ptr.vmem [resolvable:$true] %s554
          %560 = dma.hbm_to_vmem [thread:$0]  %s0, 256, %s555, [#allocation4], 128, 128, 8
        $region16: #{tpu_custom_call.1} parent=11 // pred_fallthru
          _
        // Predicated region
        $region17: #{tpu_custom_call.1} parent=11 // pred_check
          %p561 = pneg %p74
        $region18: #{tpu_custom_call.1} parent=11 // pred_check_branch
          %563 = sbr.rel (%p561) target = $region20
        $region19: #{tpu_custom_call.1} parent=11 // pred_region
          %s565 = ssub.s32 16, 16
          %566 = vsyncadd [#allocation8], %s565
          %s568 = sshll.u32 [#allocation7], 4
          %s569 = int_to_ptr.vmem [resolvable:$true] %s568
          %571 = dma.hbm_to_vmem [thread:$0]  %s1, 16, %s569, [#allocation8]
        $region20: #{tpu_custom_call.1} parent=11 // pred_fallthru
          _
        // Predicated region
        $region21: #{tpu_custom_call.1} parent=11 // pred_check
          %p572 = pneg %p95
        $region22: #{tpu_custom_call.1} parent=11 // pred_check_branch
          %574 = sbr.rel (%p572) target = $region24
        $region23: #{tpu_custom_call.1} parent=11 // pred_region
          %s576 = ssub.s32 16, 16
          %577 = vsyncadd [#allocation8], %s576
          %s579 = sshll.u32 [#allocation9], 4
          %s580 = int_to_ptr.vmem [resolvable:$true] %s579
          %582 = dma.hbm_to_vmem [thread:$0]  %s2, 16, %s580, [#allocation8]
        $region24: #{tpu_custom_call.1} parent=11 // pred_fallthru
          _
        // Predicated region
        $region25: #{tpu_custom_call.1} parent=11 // pred_check
          %p583 = pneg %p116
        $region26: #{tpu_custom_call.1} parent=11 // pred_check_branch
          %585 = sbr.rel (%p583) target = $region28
        $region27: #{tpu_custom_call.1} parent=11 // pred_region
          %s587 = ssub.s32 256, 256
          %588 = vsyncadd [#allocation11], %s587
          %s589 = sshll.u32 [#allocation10], 4
          %s590 = int_to_ptr.vmem [resolvable:$true] %s589
          %595 = dma.hbm_to_vmem [thread:$0]  %s3, 256, %s590, [#allocation11], 128, 128, 8
        $region28: #{tpu_custom_call.1} parent=11 // pred_fallthru
          _
        // Predicated region
        $region29: #{tpu_custom_call.1} parent=11 // pred_check
          %p596 = pneg %p449
        $region30: #{tpu_custom_call.1} parent=11 // pred_check_branch
          %598 = sbr.rel (%p596) target = $region32
        $region31: #{tpu_custom_call.1} parent=11 // pred_region
          _
        $region32: #{tpu_custom_call.1} parent=11 // pred_fallthru
          _
        // Predicated region
        $region33: #{tpu_custom_call.1} parent=11 // pred_check
          %p599 = pneg %p470
        $region34: #{tpu_custom_call.1} parent=11 // pred_check_branch
          %601 = sbr.rel (%p599) target = $region36
        $region35: #{tpu_custom_call.1} parent=11 // pred_region
          %s603 = ssub.s32 16, 16
          %604 = vsyncadd [#allocation8], %s603
          %s606 = sshll.u32 [#allocation20], 4
          %s607 = int_to_ptr.vmem [resolvable:$true] %s606
          %609 = dma.hbm_to_vmem [thread:$0]  %s17, 16, %s607, [#allocation8]
        $region36: #{tpu_custom_call.1} parent=11 // pred_fallthru
          _
        // Predicated region
        $region37: #{tpu_custom_call.1} parent=11 // pred_check
          %p610 = pneg %p491
        $region38: #{tpu_custom_call.1} parent=11 // pred_check_branch
          %612 = sbr.rel (%p610) target = $region40
        $region39: #{tpu_custom_call.1} parent=11 // pred_region
          _
        $region40: #{tpu_custom_call.1} parent=11 // pred_fallthru
          _
      $region12: #{tpu_custom_call.1} parent=5 // pred_fallthru
        _
      %p613 = scmp.lt.s32.totalorder %s32, 2
      // Predicated region
      $region41: #{tpu_custom_call.1} parent=5 // pred_check
        %p614 = pneg %p613
      $region42: #{tpu_custom_call.1} parent=5 // pred_check_branch
        %616 = sbr.rel (%p614) target = $region44
      $region43: #{tpu_custom_call.1} parent=5 // pred_region
        // Predicated region
        $region45: #{tpu_custom_call.1} parent=43 // pred_check
          %p617 = pneg %p136
        $region46: #{tpu_custom_call.1} parent=43 // pred_check_branch
          %619 = sbr.rel (%p617) target = $region48
        $region47: #{tpu_custom_call.1} parent=43 // pred_region
          %p620 = scmp.lt.s32.totalorder %s32, 1
          %s621 = scalar_select %p620, %s32, 1
          %s622 = smul.addr %s621, 4
          %s623 = smul.addr %s622, 8
          %s624 = scalar_lea.vmem %s4, %s623
        $region48: #{tpu_custom_call.1} parent=43 // pred_fallthru
          _
        // Predicated region
        $region49: #{tpu_custom_call.1} parent=43 // pred_check
          %p625 = pneg %p162
        $region50: #{tpu_custom_call.1} parent=43 // pred_check_branch
          %627 = sbr.rel (%p625) target = $region52
        $region51: #{tpu_custom_call.1} parent=43 // pred_region
          %s628 = sand.u32 %s32, 1
          %s629 = scalar_lea.sflag [#allocation4], %s628
          %s630 = sand.u32 %s152, 1
          %s631 = scalar_lea.vmem [#allocation12], %s630
          %s633 = ssub.s32 16, 16
          %634 = vsyncadd %s629, %s633
          %s635 = smul.addr %s32, 16
          %s636 = scalar_lea.hbm %s5, %s635
          %s638 = sshll.u32 %s631, 4
          %s639 = int_to_ptr.vmem [resolvable:$true] %s638
          %641 = dma.hbm_to_vmem [thread:$0]  %s636, 16, %s639, %s629
        $region52: #{tpu_custom_call.1} parent=43 // pred_fallthru
          _
        // Predicated region
        $region53: #{tpu_custom_call.1} parent=43 // pred_check
          %p642 = pneg %p188
        $region54: #{tpu_custom_call.1} parent=43 // pred_check_branch
          %644 = sbr.rel (%p642) target = $region56
        $region55: #{tpu_custom_call.1} parent=43 // pred_region
          %p645 = scmp.lt.s32.totalorder %s32, 1
          %s646 = scalar_select %p645, %s32, 1
          %s647 = smul.addr %s646, 4
          %s648 = smul.addr %s647, 8
          %s649 = scalar_lea.vmem %s6, %s648
        $region56: #{tpu_custom_call.1} parent=43 // pred_fallthru
          _
        // Predicated region
        $region57: #{tpu_custom_call.1} parent=43 // pred_check
          %p650 = pneg %p214
        $region58: #{tpu_custom_call.1} parent=43 // pred_check_branch
          %652 = sbr.rel (%p650) target = $region60
        $region59: #{tpu_custom_call.1} parent=43 // pred_region
          %s653 = sand.u32 %s32, 1
          %s654 = scalar_lea.sflag [#allocation4], %s653
          %s655 = sand.u32 %s204, 1
          %s656 = scalar_lea.vmem [#allocation13], %s655
          %s658 = ssub.s32 16, 16
          %659 = vsyncadd %s654, %s658
          %s660 = smul.addr %s32, 16
          %s661 = scalar_lea.hbm %s7, %s660
          %s663 = sshll.u32 %s656, 4
          %s664 = int_to_ptr.vmem [resolvable:$true] %s663
          %666 = dma.hbm_to_vmem [thread:$0]  %s661, 16, %s664, %s654
        $region60: #{tpu_custom_call.1} parent=43 // pred_fallthru
          _
        // Predicated region
        $region61: #{tpu_custom_call.1} parent=43 // pred_check
          %p667 = pneg %p240
        $region62: #{tpu_custom_call.1} parent=43 // pred_check_branch
          %669 = sbr.rel (%p667) target = $region64
        $region63: #{tpu_custom_call.1} parent=43 // pred_region
          %s670 = sand.u32 %s32, 1
          %s671 = scalar_lea.sflag [#allocation4], %s670
          %s672 = sand.u32 %s230, 1
          %s673 = scalar_lea.vmem [#allocation14], %s672
          %s675 = ssub.s32 16, 16
          %676 = vsyncadd %s671, %s675
          %s677 = smul.addr %s32, 16
          %s678 = scalar_lea.hbm %s8, %s677
          %s680 = sshll.u32 %s673, 4
          %s681 = int_to_ptr.vmem [resolvable:$true] %s680
          %683 = dma.hbm_to_vmem [thread:$0]  %s678, 16, %s681, %s671
        $region64: #{tpu_custom_call.1} parent=43 // pred_fallthru
          _
        // Predicated region
        $region65: #{tpu_custom_call.1} parent=43 // pred_check
          %p684 = pneg %p266
        $region66: #{tpu_custom_call.1} parent=43 // pred_check_branch
          %686 = sbr.rel (%p684) target = $region68
        $region67: #{tpu_custom_call.1} parent=43 // pred_region
          %s687 = sand.u32 %s32, 1
          %s688 = scalar_lea.sflag [#allocation4], %s687
          %s689 = sand.u32 %s256, 1
          %s690 = scalar_lea.vmem [#allocation15], %s689
          %s692 = ssub.s32 16, 16
          %693 = vsyncadd %s688, %s692
          %s694 = smul.addr %s32, 16
          %s695 = scalar_lea.hbm %s9, %s694
          %s697 = sshll.u32 %s690, 4
          %s698 = int_to_ptr.vmem [resolvable:$true] %s697
          %700 = dma.hbm_to_vmem [thread:$0]  %s695, 16, %s698, %s688
        $region68: #{tpu_custom_call.1} parent=43 // pred_fallthru
          _
        // Predicated region
        $region69: #{tpu_custom_call.1} parent=43 // pred_check
          %p701 = pneg %p292
        $region70: #{tpu_custom_call.1} parent=43 // pred_check_branch
          %703 = sbr.rel (%p701) target = $region72
        $region71: #{tpu_custom_call.1} parent=43 // pred_region
          %p704 = scmp.lt.s32.totalorder %s32, 1
          %s705 = scalar_select %p704, %s32, 1
          %s706 = smul.addr %s705, 4
          %s707 = smul.addr %s706, 8
          %s708 = scalar_lea.vmem %s10, %s707
        $region72: #{tpu_custom_call.1} parent=43 // pred_fallthru
          _
        // Predicated region
        $region73: #{tpu_custom_call.1} parent=43 // pred_check
          %p709 = pneg %p318
        $region74: #{tpu_custom_call.1} parent=43 // pred_check_branch
          %711 = sbr.rel (%p709) target = $region76
        $region75: #{tpu_custom_call.1} parent=43 // pred_region
          %s712 = sand.u32 %s32, 1
          %s713 = scalar_lea.sflag [#allocation4], %s712
          %s714 = sand.u32 %s308, 1
          %s715 = scalar_lea.vmem [#allocation16], %s714
          %s717 = ssub.s32 16, 16
          %718 = vsyncadd %s713, %s717
          %s719 = smul.addr %s32, 16
          %s720 = scalar_lea.hbm %s11, %s719
          %s722 = sshll.u32 %s715, 4
          %s723 = int_to_ptr.vmem [resolvable:$true] %s722
          %725 = dma.hbm_to_vmem [thread:$0]  %s720, 16, %s723, %s713
        $region76: #{tpu_custom_call.1} parent=43 // pred_fallthru
          _
        // Predicated region
        $region77: #{tpu_custom_call.1} parent=43 // pred_check
          %p726 = pneg %p344
        $region78: #{tpu_custom_call.1} parent=43 // pred_check_branch
          %728 = sbr.rel (%p726) target = $region80
        $region79: #{tpu_custom_call.1} parent=43 // pred_region
          %p729 = scmp.lt.s32.totalorder %s32, 1
          %s730 = scalar_select %p729, %s32, 1
          %s731 = smul.addr %s730, 8
          %s732 = smul.addr %s731, 8
          %s733 = scalar_lea.vmem %s12, %s732
        $region80: #{tpu_custom_call.1} parent=43 // pred_fallthru
          _
        // Predicated region
        $region81: #{tpu_custom_call.1} parent=43 // pred_check
          %p734 = pneg %p370
        $region82: #{tpu_custom_call.1} parent=43 // pred_check_branch
          %736 = sbr.rel (%p734) target = $region84
        $region83: #{tpu_custom_call.1} parent=43 // pred_region
          %s737 = sand.u32 %s32, 1
          %s738 = scalar_lea.sflag [#allocation4], %s737
          %s739 = sand.u32 %s360, 1
          %s740 = scalar_lea.vmem [#allocation17], %s739
          %s742 = ssub.s32 16, 16
          %743 = vsyncadd %s738, %s742
          %s744 = smul.addr %s32, 16
          %s745 = scalar_lea.hbm %s13, %s744
          %s747 = sshll.u32 %s740, 4
          %s748 = int_to_ptr.vmem [resolvable:$true] %s747
          %750 = dma.hbm_to_vmem [thread:$0]  %s745, 16, %s748, %s738
        $region84: #{tpu_custom_call.1} parent=43 // pred_fallthru
          _
        // Predicated region
        $region85: #{tpu_custom_call.1} parent=43 // pred_check
          %p751 = pneg %p396
        $region86: #{tpu_custom_call.1} parent=43 // pred_check_branch
          %753 = sbr.rel (%p751) target = $region88
        $region87: #{tpu_custom_call.1} parent=43 // pred_region
          %s754 = sand.u32 %s32, 1
          %s755 = scalar_lea.sflag [#allocation4], %s754
          %s756 = sand.u32 %s386, 1
          %s757 = scalar_lea.vmem [#allocation18], %s756
          %s759 = ssub.s32 16, 16
          %760 = vsyncadd %s755, %s759
          %s761 = smul.addr %s32, 16
          %s762 = scalar_lea.hbm %s14, %s761
          %s764 = sshll.u32 %s757, 4
          %s765 = int_to_ptr.vmem [resolvable:$true] %s764
          %767 = dma.hbm_to_vmem [thread:$0]  %s762, 16, %s765, %s755
        $region88: #{tpu_custom_call.1} parent=43 // pred_fallthru
          _
        // Predicated region
        $region89: #{tpu_custom_call.1} parent=43 // pred_check
          %p768 = pneg %p422
        $region90: #{tpu_custom_call.1} parent=43 // pred_check_branch
          %770 = sbr.rel (%p768) target = $region92
        $region91: #{tpu_custom_call.1} parent=43 // pred_region
          %s771 = sand.u32 %s32, 1
          %s772 = scalar_lea.sflag [#allocation4], %s771
          %s773 = sand.u32 %s412, 1
          %s774 = scalar_lea.vmem [#allocation19], %s773
          %s776 = ssub.s32 16, 16
          %777 = vsyncadd %s772, %s776
          %s778 = smul.addr %s32, 16
          %s779 = scalar_lea.hbm %s15, %s778
          %s781 = sshll.u32 %s774, 4
          %s782 = int_to_ptr.vmem [resolvable:$true] %s781
          %784 = dma.hbm_to_vmem [thread:$0]  %s779, 16, %s782, %s772
        $region92: #{tpu_custom_call.1} parent=43 // pred_fallthru
          _
      $region44: #{tpu_custom_call.1} parent=5 // pred_fallthru
        _
      %p785 = scmp.le.s32.totalorder 1, %s32
      %p786 = scmp.lt.s32.totalorder %s32, 3
      %p787 = pnand %p785, %p786
      %p788 = pneg %p787
      // Predicated region
      $region93: #{tpu_custom_call.1} parent=5 // pred_check
        _
      $region94: #{tpu_custom_call.1} parent=5 // pred_check_branch
        %790 = sbr.rel (%p787) target = $region96
      $region95: #{tpu_custom_call.1} parent=5 // pred_region
        %s791 = ssub.s32 %s32, 1
        // Predicated region
        $region97: #{tpu_custom_call.1} parent=95 // pred_check
          %p792 = pneg %p53
        $region98: #{tpu_custom_call.1} parent=95 // pred_check_branch
          %794 = sbr.rel (%p792) target = $region100
        $region99: #{tpu_custom_call.1} parent=95 // pred_region
          %795 = dma.done [#allocation4], 256
        $region100: #{tpu_custom_call.1} parent=95 // pred_fallthru
          _
        // Predicated region
        $region101: #{tpu_custom_call.1} parent=95 // pred_check
          %p796 = pneg %p74
        $region102: #{tpu_custom_call.1} parent=95 // pred_check_branch
          %798 = sbr.rel (%p796) target = $region104
        $region103: #{tpu_custom_call.1} parent=95 // pred_region
          %799 = dma.done [#allocation8], 16
        $region104: #{tpu_custom_call.1} parent=95 // pred_fallthru
          _
        // Predicated region
        $region105: #{tpu_custom_call.1} parent=95 // pred_check
          %p800 = pneg %p95
        $region106: #{tpu_custom_call.1} parent=95 // pred_check_branch
          %802 = sbr.rel (%p800) target = $region108
        $region107: #{tpu_custom_call.1} parent=95 // pred_region
          %803 = dma.done [#allocation8], 16
        $region108: #{tpu_custom_call.1} parent=95 // pred_fallthru
          _
        // Predicated region
        $region109: #{tpu_custom_call.1} parent=95 // pred_check
          %p804 = pneg %p116
        $region110: #{tpu_custom_call.1} parent=95 // pred_check_branch
          %806 = sbr.rel (%p804) target = $region112
        $region111: #{tpu_custom_call.1} parent=95 // pred_region
          %807 = dma.done [#allocation11], 256
        $region112: #{tpu_custom_call.1} parent=95 // pred_fallthru
          _
        %s808 = sand.u32 %s37, 1
        %s809 = scalar_lea.sflag [#allocation4], %s808
        %s810 = sand.u32 %s155, 1
        %s811 = scalar_lea.vmem [#allocation12], %s810
        // Predicated region
        $region113: #{tpu_custom_call.1} parent=95 // pred_check
          %p812 = pneg %p168
        $region114: #{tpu_custom_call.1} parent=95 // pred_check_branch
          %814 = sbr.rel (%p812) target = $region116
        $region115: #{tpu_custom_call.1} parent=95 // pred_region
          %815 = dma.done %s809, 16
        $region116: #{tpu_custom_call.1} parent=95 // pred_fallthru
          _
        %s816 = sand.u32 %s37, 1
        %s817 = scalar_lea.sflag [#allocation4], %s816
        %s818 = sand.u32 %s207, 1
        %s819 = scalar_lea.vmem [#allocation13], %s818
        // Predicated region
        $region117: #{tpu_custom_call.1} parent=95 // pred_check
          %p820 = pneg %p220
        $region118: #{tpu_custom_call.1} parent=95 // pred_check_branch
          %822 = sbr.rel (%p820) target = $region120
        $region119: #{tpu_custom_call.1} parent=95 // pred_region
          %823 = dma.done %s817, 16
        $region120: #{tpu_custom_call.1} parent=95 // pred_fallthru
          _
        %s824 = sand.u32 %s37, 1
        %s825 = scalar_lea.sflag [#allocation4], %s824
        %s826 = sand.u32 %s233, 1
        %s827 = scalar_lea.vmem [#allocation14], %s826
        // Predicated region
        $region121: #{tpu_custom_call.1} parent=95 // pred_check
          %p828 = pneg %p246
        $region122: #{tpu_custom_call.1} parent=95 // pred_check_branch
          %830 = sbr.rel (%p828) target = $region124
        $region123: #{tpu_custom_call.1} parent=95 // pred_region
          %831 = dma.done %s825, 16
        $region124: #{tpu_custom_call.1} parent=95 // pred_fallthru
          _
        %s832 = sand.u32 %s37, 1
        %s833 = scalar_lea.sflag [#allocation4], %s832
        %s834 = sand.u32 %s259, 1
        %s835 = scalar_lea.vmem [#allocation15], %s834
        // Predicated region
        $region125: #{tpu_custom_call.1} parent=95 // pred_check
          %p836 = pneg %p272
        $region126: #{tpu_custom_call.1} parent=95 // pred_check_branch
          %838 = sbr.rel (%p836) target = $region128
        $region127: #{tpu_custom_call.1} parent=95 // pred_region
          %839 = dma.done %s833, 16
        $region128: #{tpu_custom_call.1} parent=95 // pred_fallthru
          _
        %s840 = sand.u32 %s37, 1
        %s841 = scalar_lea.sflag [#allocation4], %s840
        %s842 = sand.u32 %s311, 1
        %s843 = scalar_lea.vmem [#allocation16], %s842
        // Predicated region
        $region129: #{tpu_custom_call.1} parent=95 // pred_check
          %p844 = pneg %p324
        $region130: #{tpu_custom_call.1} parent=95 // pred_check_branch
          %846 = sbr.rel (%p844) target = $region132
        $region131: #{tpu_custom_call.1} parent=95 // pred_region
          %847 = dma.done %s841, 16
        $region132: #{tpu_custom_call.1} parent=95 // pred_fallthru
          _
        %s848 = sand.u32 %s37, 1
        %s849 = scalar_lea.sflag [#allocation4], %s848
        %s850 = sand.u32 %s363, 1
        %s851 = scalar_lea.vmem [#allocation17], %s850
        // Predicated region
        $region133: #{tpu_custom_call.1} parent=95 // pred_check
          %p852 = pneg %p376
        $region134: #{tpu_custom_call.1} parent=95 // pred_check_branch
          %854 = sbr.rel (%p852) target = $region136
        $region135: #{tpu_custom_call.1} parent=95 // pred_region
          %855 = dma.done %s849, 16
        $region136: #{tpu_custom_call.1} parent=95 // pred_fallthru
          _
        %s856 = sand.u32 %s37, 1
        %s857 = scalar_lea.sflag [#allocation4], %s856
        %s858 = sand.u32 %s389, 1
        %s859 = scalar_lea.vmem [#allocation18], %s858
        // Predicated region
        $region137: #{tpu_custom_call.1} parent=95 // pred_check
          %p860 = pneg %p402
        $region138: #{tpu_custom_call.1} parent=95 // pred_check_branch
          %862 = sbr.rel (%p860) target = $region140
        $region139: #{tpu_custom_call.1} parent=95 // pred_region
          %863 = dma.done %s857, 16
        $region140: #{tpu_custom_call.1} parent=95 // pred_fallthru
          _
        %s864 = sand.u32 %s37, 1
        %s865 = scalar_lea.sflag [#allocation4], %s864
        %s866 = sand.u32 %s415, 1
        %s867 = scalar_lea.vmem [#allocation19], %s866
        // Predicated region
        $region141: #{tpu_custom_call.1} parent=95 // pred_check
          %p868 = pneg %p428
        $region142: #{tpu_custom_call.1} parent=95 // pred_check_branch
          %870 = sbr.rel (%p868) target = $region144
        $region143: #{tpu_custom_call.1} parent=95 // pred_region
          %871 = dma.done %s865, 16
        $region144: #{tpu_custom_call.1} parent=95 // pred_fallthru
          _
        // Predicated region
        $region145: #{tpu_custom_call.1} parent=95 // pred_check
          %p872 = pneg %p470
        $region146: #{tpu_custom_call.1} parent=95 // pred_check_branch
          %874 = sbr.rel (%p872) target = $region148
        $region147: #{tpu_custom_call.1} parent=95 // pred_region
          %875 = dma.done [#allocation8], 16
        $region148: #{tpu_custom_call.1} parent=95 // pred_fallthru
          _
        %p876 = pneg %p53
        %p877 = pneg %p50
        %p878 = pneg %p74
        %p879 = pneg %p71
        %p880 = pneg %p95
        %p881 = pneg %p92
        %p882 = pneg %p116
        %p883 = pneg %p113
        %p884 = scmp.lt.s32.totalorder %s37, 1
        %s885 = scalar_select %p884, %s37, 1
        %s886 = smul.addr %s885, 4
        %s887 = smul.addr %s886, 8
        %s888 = scalar_lea.vmem %s4, %s887
        %p889 = pneg %p142
        %p890 = pneg %p139
        %s891 = sand.u32 %s37, 1
        %s892 = scalar_lea.sflag [#allocation4], %s891
        %s893 = sand.u32 %s155, 1
        %s894 = scalar_lea.vmem [#allocation12], %s893
        %p895 = pneg %p168
        %p896 = pneg %p165
        %p897 = scmp.lt.s32.totalorder %s37, 1
        %s898 = scalar_select %p897, %s37, 1
        %s899 = smul.addr %s898, 4
        %s900 = smul.addr %s899, 8
        %s901 = scalar_lea.vmem %s6, %s900
        %p902 = pneg %p194
        %p903 = pneg %p191
        %s904 = sand.u32 %s37, 1
        %s905 = scalar_lea.sflag [#allocation4], %s904
        %s906 = sand.u32 %s207, 1
        %s907 = scalar_lea.vmem [#allocation13], %s906
        %p908 = pneg %p220
        %p909 = pneg %p217
        %s910 = sand.u32 %s37, 1
        %s911 = scalar_lea.sflag [#allocation4], %s910
        %s912 = sand.u32 %s233, 1
        %s913 = scalar_lea.vmem [#allocation14], %s912
        %p914 = pneg %p246
        %p915 = pneg %p243
        %s916 = sand.u32 %s37, 1
        %s917 = scalar_lea.sflag [#allocation4], %s916
        %s918 = sand.u32 %s259, 1
        %s919 = scalar_lea.vmem [#allocation15], %s918
        %p920 = pneg %p272
        %p921 = pneg %p269
        %p922 = scmp.lt.s32.totalorder %s37, 1
        %s923 = scalar_select %p922, %s37, 1
        %s924 = smul.addr %s923, 4
        %s925 = smul.addr %s924, 8
        %s926 = scalar_lea.vmem %s10, %s925
        %p927 = pneg %p298
        %p928 = pneg %p295
        %s929 = sand.u32 %s37, 1
        %s930 = scalar_lea.sflag [#allocation4], %s929
        %s931 = sand.u32 %s311, 1
        %s932 = scalar_lea.vmem [#allocation16], %s931
        %p933 = pneg %p324
        %p934 = pneg %p321
        %p935 = scmp.lt.s32.totalorder %s37, 1
        %s936 = scalar_select %p935, %s37, 1
        %s937 = smul.addr %s936, 8
        %s938 = smul.addr %s937, 8
        %s939 = scalar_lea.vmem %s12, %s938
        %p940 = pneg %p350
        %p941 = pneg %p347
        %s942 = sand.u32 %s37, 1
        %s943 = scalar_lea.sflag [#allocation4], %s942
        %s944 = sand.u32 %s363, 1
        %s945 = scalar_lea.vmem [#allocation17], %s944
        %p946 = pneg %p376
        %p947 = pneg %p373
        %s948 = sand.u32 %s37, 1
        %s949 = scalar_lea.sflag [#allocation4], %s948
        %s950 = sand.u32 %s389, 1
        %s951 = scalar_lea.vmem [#allocation18], %s950
        %p952 = pneg %p402
        %p953 = pneg %p399
        %s954 = sand.u32 %s37, 1
        %s955 = scalar_lea.sflag [#allocation4], %s954
        %s956 = sand.u32 %s415, 1
        %s957 = scalar_lea.vmem [#allocation19], %s956
        %p958 = pneg %p428
        %p959 = pneg %p425
        %p960 = pneg %p449
        %p961 = pneg %p446
        %p962 = pneg %p470
        %p963 = pneg %p467
        %p964 = pneg %p491
        %p965 = pneg %p488
        %p966 = pneg %p512
        %p967 = pneg %p509
        %p968 = pneg %p533
        %p969 = pneg %p530
        %p970 = scmp.lt.s32.totalorder %s37, 1
        %s971 = scalar_select %p970, %s37, 1
        %s972 = smul.addr %s971, 4
        %s973 = smul.addr %s972, 8
        %s974 = scalar_lea.vmem %s4, %s973
        %p975 = scmp.lt.s32.totalorder %s37, 1
        %s976 = scalar_select %p975, %s37, 1
        %s977 = smul.addr %s976, 4
        %s978 = smul.addr %s977, 8
        %s979 = scalar_lea.vmem %s6, %s978
        %p980 = scmp.lt.s32.totalorder %s37, 1
        %s981 = scalar_select %p980, %s37, 1
        %s982 = smul.addr %s981, 4
        %s983 = smul.addr %s982, 8
        %s984 = scalar_lea.vmem %s10, %s983
        %p985 = scmp.lt.s32.totalorder %s37, 1
        %s986 = scalar_select %p985, %s37, 1
        %s987 = smul.addr %s986, 8
        %s988 = smul.addr %s987, 8
        %s989 = scalar_lea.vmem %s12, %s988
        %p990 = scmp.eq.s32.totalorder %s37, 0
        // Predicated region
        $region149: #{tpu_custom_call.1} parent=95 // pred_check
          %p991 = pneg %p990
        $region150: #{tpu_custom_call.1} parent=95 // pred_check_branch
          %993 = sbr.rel (%p991) target = $region152
        $region151: #{tpu_custom_call.1} parent=95 // pred_region
          %v994 = vld [vmem:[#allocation3] sm:$0xff]
          %v995 = vld [vmem:[#allocation3 + $0x8] sm:$0xff]
          %v996 = vld [vmem:[#allocation7] sm:$0x1]
          %v997 = vld [vmem:[#allocation9] sm:$0x1]
          %vm998 = vcmask 261120
          %v999 = vsel %vm998, %v994, 0.0
          %1000 = vadd.xlane.f32.xlu0 %v999
          %v1001 = vpop.xlane.xlu0 %1000
          %v1002 = vsel %vm998, %v995, 0.0
          %1003 = vadd.xlane.f32.xlu0 %v1002
          %v1004 = vpop.xlane.xlu0 %1003
          %v1005 = vrcp.pop 32.0
          %v1006 = vmul.f32 %v1001, %v1005
          %v1007 = vmul.f32 %v1004, %v1005
          %v1008 = vsub.f32 %v994, %v1006
          %v1009 = vsub.f32 %v995, %v1007
          %v1010 = vmul.f32 %v1008, %v1008
          %v1011 = vmul.f32 %v1009, %v1009
          %v1012 = vsel %vm998, %v1010, 0.0
          %1013 = vadd.xlane.f32.xlu0 %v1012
          %v1014 = vpop.xlane.xlu0 %1013
          %v1015 = vsel %vm998, %v1011, 0.0
          %1016 = vadd.xlane.f32.xlu0 %v1015
          %v1017 = vpop.xlane.xlu0 %1016
          %v1018 = vmul.f32 %v1014, %v1005
          %v1019 = vmul.f32 %v1017, %v1005
          %v1020 = vadd.f32 %v1018, 1e-12
          %v1021 = vadd.f32 %v1019, 1e-12
          %v1022 = vrsqrt.pop %v1020
          %v1023 = vrsqrt.pop %v1021
          %v1024 = vmul.f32 %v1008, %v1022
          %v1025 = vmul.f32 %v1009, %v1023
          %v1027 = vlaneseq
          %v1028 = vshrl.u32 %v1027, 7
          %v1029 = vsub.s32 0, %v1028
          %v1030 = vrot.slane %v996, %v1029
          %v1032 = vmul.f32 %v1024, %v1030
          %v1033 = vmul.f32 %v1025, %v1030
          %v1035 = vlaneseq
          %v1036 = vshrl.u32 %v1035, 7
          %v1037 = vsub.s32 0, %v1036
          %v1038 = vrot.slane %v997, %v1037
          %v1040 = vadd.f32 %v1032, %v1038
          %v1041 = vadd.f32 %v1033, %v1038
          %1042 = vst.msk [vmem:[#allocation2] sm:$0xff] %vm998, %v1040
          %1043 = vst.msk [vmem:[#allocation2 + $0x8] sm:$0xff] %vm998, %v1041
        $region152: #{tpu_custom_call.1} parent=95 // pred_fallthru
          _
        %v1044 = vld [vmem:[#allocation2] sm:$0xff]
        %v1045 = vld [vmem:[#allocation2 + $0x8] sm:$0xff]
        %v1046 = vld [vmem:[#allocation10] sm:$0xff]
        %v1047 = vld [vmem:[#allocation10 + $0x8] sm:$0xff]
        %v1048 = vld [vmem:[%s974] sm:$0xff]
        %v1049 = vld [vmem:[%s974 + $0x8] sm:$0xff]
        %v1050 = vld [vmem:[%s974 + $0x10] sm:$0xff]
        %v1051 = vld [vmem:[%s974 + $0x18] sm:$0xff]
        %v1052 = vld [vmem:[%s811] sm:$0x1]
        %v1054 = vlaneseq
        %v1055 = vshrl.u32 %v1054, 7
        %v1056 = vsub.s32 0, %v1055
        %v1057 = vrot.slane %v1052, %v1056
        %vm1059 = vcmask 261120
        %v1061 = vsel %vm1059, %v1044, 0
        %v1064 = vsel %vm1059, %v1045, 0
        %1066 = vmatprep.subr.mxu0 0.0
        %1067 = vmatpush1.msra.mxu0 0.0
        %1068 = vmatprep.subr.mxu0 0.0
        %1069 = vmatpush1.msra.mxu0 0.0
        %1070 = vmatprep.subr.mxu0 0.0
        %1071 = vmatpush1.msra.mxu0 0.0
        %1072 = vmatprep.subr.mxu0 0.0
        %1073 = vmatpush1.msra.mxu0 0.0
        %1074 = vmatprep.subr.mxu0 0.0
        %1075 = vmatpush1.msra.mxu0 0.0
        %1076 = vmatprep.subr.mxu0 0.0
        %1077 = vmatpush1.msra.mxu0 0.0
        %1078 = vmatprep.subr.mxu0 0.0
        %1079 = vmatpush1.msra.mxu0 0.0
        %1080 = vmatprep.subr.mxu0 0.0
        %1081 = vmatpush1.msra.mxu0 0.0
        %1082 = vmatprep.subr.mxu0 0.0
        %1083 = vmatpush1.msra.mxu0 0.0
        %1084 = vmatprep.subr.mxu0 0.0
        %1085 = vmatpush1.msra.mxu0 0.0
        %1086 = vmatprep.subr.mxu0 0.0
        %1087 = vmatpush1.msra.mxu0 0.0
        %1088 = vmatprep.subr.mxu0 0.0
        %1089 = vmatpush1.msra.mxu0 0.0
        %1090 = vmatprep.subr.mxu0 0.0
        %1091 = vmatpush1.msra.mxu0 %v1051
        %1092 = vmatprep.subr.mxu0 0.0
        %1093 = vmatpush1.msra.mxu0 %v1050
        %1094 = vmatprep.subr.mxu0 0.0
        %1095 = vmatpush1.msra.mxu0 %v1049
        %1096 = vmatprep.subr.mxu0 0.0
        %1097 = vmatpush1.msra.mxu0 %v1048
        %1098 = vmatprep.subr.mxu0 0.0
        %1099 = vmatpush2.msra.mxu0 0.0
        %1100 = vmatprep.subr.mxu0 0.0
        %1101 = vmatpush2.msra.mxu0 0.0
        %1102 = vmatprep.subr.mxu0 0.0
        %1103 = vmatpush2.msra.mxu0 0.0
        %1104 = vmatprep.subr.mxu0 0.0
        %1105 = vmatpush2.msra.mxu0 0.0
        %1106 = vmatprep.subr.mxu0 0.0
        %1107 = vmatpush2.msra.mxu0 0.0
        %1108 = vmatprep.subr.mxu0 0.0
        %1109 = vmatpush2.msra.mxu0 0.0
        %1110 = vmatprep.subr.mxu0 0.0
        %1111 = vmatpush2.msra.mxu0 0.0
        %1112 = vmatprep.subr.mxu0 0.0
        %1113 = vmatpush2.msra.mxu0 0.0
        %1114 = vmatprep.subr.mxu0 0.0
        %1115 = vmatpush2.msra.mxu0 0.0
        %1116 = vmatprep.subr.mxu0 0.0
        %1117 = vmatpush2.msra.mxu0 0.0
        %1118 = vmatprep.subr.mxu0 0.0
        %1119 = vmatpush2.msra.mxu0 0.0
        %1120 = vmatprep.subr.mxu0 0.0
        %1121 = vmatpush2.msra.mxu0 0.0
        %1122 = vmatprep.subr.mxu0 0.0
        %1123 = vmatpush2.msra.mxu0 0.0
        %1124 = vmatprep.subr.mxu0 0.0
        %1125 = vmatpush2.msra.mxu0 0.0
        %1126 = vmatprep.subr.mxu0 0.0
        %1127 = vmatpush2.msra.mxu0 0.0
        %1128 = vmatprep.subr.mxu0 0.0
        %1129 = vmatpush2.msra.mxu0 0.0
        %1130 = vmatprep.mubr.f32.mxu0 0.0
        %1131 = vmatmul.mubr.f32.gmra.mxu0 %v1061
        %v1132 = vpop.f32.mrf.mxu0
        %v1133 = vadd.f32 %v1057, %v1132
        %v1134 = vpop.f32.mrf.mxu0
        %1135 = vmatprep.mubr.f32.mxu0 0.0
        %1136 = vmatmul.mubr.f32.gmra.mxu0 %v1064
        %v1137 = vpop.f32.mrf.mxu0
        %v1138 = vadd.f32 %v1057, %v1137
        %v1139 = vpop.f32.mrf.mxu0
        %1140 = vdwg.mxu0
        %1142 = vrot.lane.b32.xlu0 %v1133, 96
        %v1143 = vpop.permute.xlu0 %1142
        %vm1144 = vcmask 130048
        %v1145 = vsel %vm1144, %v1133, 0
        %v1147 = vsel %vm1144, %v1143, 0
        %1149 = vmatprep.subr.mxu0 0.0
        %1150 = vmatpush1.xpose.msra.mxu0 0.0
        %1151 = vmatprep.subr.mxu0 0.0
        %1152 = vmatpush1.xpose.msra.mxu0 0.0
        %1153 = vmatprep.subr.mxu0 0.0
        %1154 = vmatpush1.xpose.msra.mxu0 0.0
        %1155 = vmatprep.subr.mxu0 0.0
        %1156 = vmatpush1.xpose.msra.mxu0 0.0
        %1157 = vmatprep.subr.mxu0 0.0
        %1158 = vmatpush1.xpose.msra.mxu0 0.0
        %1159 = vmatprep.subr.mxu0 0.0
        %1160 = vmatpush1.xpose.msra.mxu0 0.0
        %1161 = vmatprep.subr.mxu0 0.0
        %1162 = vmatpush1.xpose.msra.mxu0 0.0
        %1163 = vmatprep.subr.mxu0 0.0
        %1164 = vmatpush1.xpose.msra.mxu0 0.0
        %1165 = vmatprep.subr.mxu0 0.0
        %1166 = vmatpush1.xpose.msra.mxu0 0.0
        %1167 = vmatprep.subr.mxu0 0.0
        %1168 = vmatpush1.xpose.msra.mxu0 0.0
        %1169 = vmatprep.subr.mxu0 0.0
        %1170 = vmatpush1.xpose.msra.mxu0 0.0
        %1171 = vmatprep.subr.mxu0 0.0
        %1172 = vmatpush1.xpose.msra.mxu0 0.0
        %1173 = vmatprep.subr.mxu0 0.0
        %1174 = vmatpush1.xpose.msra.mxu0 0.0
        %1175 = vmatprep.subr.mxu0 0.0
        %1176 = vmatpush1.xpose.msra.mxu0 0.0
        %1177 = vmatprep.subr.mxu0 0.0
        %1178 = vmatpush1.xpose.msra.mxu0 0.0
        %1179 = vmatprep.subr.mxu0 0.0
        %1180 = vmatpush1.xpose.msra.mxu0 %v1147
        %1181 = vmatprep.subr.mxu0 0.0
        %1182 = vmatpush2.xpose.msra.mxu0 0.0
        %1183 = vmatprep.subr.mxu0 0.0
        %1184 = vmatpush2.xpose.msra.mxu0 0.0
        %1185 = vmatprep.subr.mxu0 0.0
        %1186 = vmatpush2.xpose.msra.mxu0 0.0
        %1187 = vmatprep.subr.mxu0 0.0
        %1188 = vmatpush2.xpose.msra.mxu0 0.0
        %1189 = vmatprep.subr.mxu0 0.0
        %1190 = vmatpush2.xpose.msra.mxu0 0.0
        %1191 = vmatprep.subr.mxu0 0.0
        %1192 = vmatpush2.xpose.msra.mxu0 0.0
        %1193 = vmatprep.subr.mxu0 0.0
        %1194 = vmatpush2.xpose.msra.mxu0 0.0
        %1195 = vmatprep.subr.mxu0 0.0
        %1196 = vmatpush2.xpose.msra.mxu0 0.0
        %1197 = vmatprep.subr.mxu0 0.0
        %1198 = vmatpush2.xpose.msra.mxu0 0.0
        %1199 = vmatprep.subr.mxu0 0.0
        %1200 = vmatpush2.xpose.msra.mxu0 0.0
        %1201 = vmatprep.subr.mxu0 0.0
        %1202 = vmatpush2.xpose.msra.mxu0 0.0
        %1203 = vmatprep.subr.mxu0 0.0
        %1204 = vmatpush2.xpose.msra.mxu0 0.0
        %1205 = vmatprep.subr.mxu0 0.0
        %1206 = vmatpush2.xpose.msra.mxu0 0.0
        %1207 = vmatprep.subr.mxu0 0.0
        %1208 = vmatpush2.xpose.msra.mxu0 0.0
        %1209 = vmatprep.subr.mxu0 0.0
        %1210 = vmatpush2.xpose.msra.mxu0 0.0
        %1211 = vmatprep.subr.mxu0 0.0
        %1212 = vmatpush2.xpose.msra.mxu0 0.0
        %1213 = vmatprep.mubr.f32.mxu0 0.0
        %1214 = vmatmul.mubr.f32.gmra.mxu0 %v1145
        %v1215 = vpop.f32.mrf.mxu0
        %v1216 = vadd.f32 %v1046, %v1215
        %v1217 = vpop.f32.mrf.mxu0
        %1218 = vdwg.mxu0
        %1220 = vrot.lane.b32.xlu0 %v1138, 96
        %v1221 = vpop.permute.xlu0 %1220
        %v1222 = vsel %vm1144, %v1138, 0
        %v1224 = vsel %vm1144, %v1221, 0
        %1226 = vmatprep.subr.mxu0 0.0
        %1227 = vmatpush1.xpose.msra.mxu0 0.0
        %1228 = vmatprep.subr.mxu0 0.0
        %1229 = vmatpush1.xpose.msra.mxu0 0.0
        %1230 = vmatprep.subr.mxu0 0.0
        %1231 = vmatpush1.xpose.msra.mxu0 0.0
        %1232 = vmatprep.subr.mxu0 0.0
        %1233 = vmatpush1.xpose.msra.mxu0 0.0
        %1234 = vmatprep.subr.mxu0 0.0
        %1235 = vmatpush1.xpose.msra.mxu0 0.0
        %1236 = vmatprep.subr.mxu0 0.0
        %1237 = vmatpush1.xpose.msra.mxu0 0.0
        %1238 = vmatprep.subr.mxu0 0.0
        %1239 = vmatpush1.xpose.msra.mxu0 0.0
        %1240 = vmatprep.subr.mxu0 0.0
        %1241 = vmatpush1.xpose.msra.mxu0 0.0
        %1242 = vmatprep.subr.mxu0 0.0
        %1243 = vmatpush1.xpose.msra.mxu0 0.0
        %1244 = vmatprep.subr.mxu0 0.0
        %1245 = vmatpush1.xpose.msra.mxu0 0.0
        %1246 = vmatprep.subr.mxu0 0.0
        %1247 = vmatpush1.xpose.msra.mxu0 0.0
        %1248 = vmatprep.subr.mxu0 0.0
        %1249 = vmatpush1.xpose.msra.mxu0 0.0
        %1250 = vmatprep.subr.mxu0 0.0
        %1251 = vmatpush1.xpose.msra.mxu0 0.0
        %1252 = vmatprep.subr.mxu0 0.0
        %1253 = vmatpush1.xpose.msra.mxu0 0.0
        %1254 = vmatprep.subr.mxu0 0.0
        %1255 = vmatpush1.xpose.msra.mxu0 0.0
        %1256 = vmatprep.subr.mxu0 0.0
        %1257 = vmatpush1.xpose.msra.mxu0 %v1224
        %1258 = vmatprep.subr.mxu0 0.0
        %1259 = vmatpush2.xpose.msra.mxu0 0.0
        %1260 = vmatprep.subr.mxu0 0.0
        %1261 = vmatpush2.xpose.msra.mxu0 0.0
        %1262 = vmatprep.subr.mxu0 0.0
        %1263 = vmatpush2.xpose.msra.mxu0 0.0
        %1264 = vmatprep.subr.mxu0 0.0
        %1265 = vmatpush2.xpose.msra.mxu0 0.0
        %1266 = vmatprep.subr.mxu0 0.0
        %1267 = vmatpush2.xpose.msra.mxu0 0.0
        %1268 = vmatprep.subr.mxu0 0.0
        %1269 = vmatpush2.xpose.msra.mxu0 0.0
        %1270 = vmatprep.subr.mxu0 0.0
        %1271 = vmatpush2.xpose.msra.mxu0 0.0
        %1272 = vmatprep.subr.mxu0 0.0
        %1273 = vmatpush2.xpose.msra.mxu0 0.0
        %1274 = vmatprep.subr.mxu0 0.0
        %1275 = vmatpush2.xpose.msra.mxu0 0.0
        %1276 = vmatprep.subr.mxu0 0.0
        %1277 = vmatpush2.xpose.msra.mxu0 0.0
        %1278 = vmatprep.subr.mxu0 0.0
        %1279 = vmatpush2.xpose.msra.mxu0 0.0
        %1280 = vmatprep.subr.mxu0 0.0
        %1281 = vmatpush2.xpose.msra.mxu0 0.0
        %1282 = vmatprep.subr.mxu0 0.0
        %1283 = vmatpush2.xpose.msra.mxu0 0.0
        %1284 = vmatprep.subr.mxu0 0.0
        %1285 = vmatpush2.xpose.msra.mxu0 0.0
        %1286 = vmatprep.subr.mxu0 0.0
        %1287 = vmatpush2.xpose.msra.mxu0 0.0
        %1288 = vmatprep.subr.mxu0 0.0
        %1289 = vmatpush2.xpose.msra.mxu0 0.0
        %1290 = vmatprep.mubr.f32.mxu0 0.0
        %1291 = vmatmul.mubr.f32.gmra.mxu0 %v1222
        %v1292 = vpop.f32.mrf.mxu0
        %v1293 = vadd.f32 %v1047, %v1292
        %v1294 = vpop.f32.mrf.mxu0
        %1295 = vdwg.mxu0
        %vm1296 = vcmask 64512
        %v1297 = vsel %vm1296, %v1216, -inf
        %1298 = vmax.xlane.f32.xlu0 %v1297
        %v1299 = vpop.xlane.xlu0 %1298
        %v1300 = vsel %vm1296, %v1293, -inf
        %1301 = vmax.xlane.f32.xlu0 %v1300
        %v1302 = vpop.xlane.xlu0 %1301
        %v1303 = vsub.f32 %v1216, %v1299
        %v1304 = vsub.f32 %v1293, %v1302
        %v1305 = vmul.f32 %v1303, 1.442695
        %v1306 = vpow.pop %v1305
        %v1307 = vmul.f32 %v1304, 1.442695
        %v1308 = vpow.pop %v1307
        %v1309 = vsel %vm1296, %v1306, 0.0
        %1310 = vadd.xlane.f32.xlu0 %v1309
        %v1311 = vpop.xlane.xlu0 %1310
        %v1312 = vsel %vm1296, %v1308, 0.0
        %1313 = vadd.xlane.f32.xlu0 %v1312
        %v1314 = vpop.xlane.xlu0 %1313
        %v1315 = vrcp.pop %v1311
        %v1316 = vrcp.pop %v1314
        %v1317 = vmul.f32 %v1306, %v1315
        %v1318 = vmul.f32 %v1308, %v1316
        %1319 = vrot.lane.b32.xlu0 %v1133, 64
        %v1320 = vpop.permute.xlu0 %1319
        %v1323 = vsel %vm1296, %v1317, 0
        %1325 = vmatprep.subr.mxu0 0.0
        %1326 = vmatpush1.msra.mxu0 0.0
        %1327 = vmatprep.subr.mxu0 0.0
        %1328 = vmatpush1.msra.mxu0 0.0
        %1329 = vmatprep.subr.mxu0 0.0
        %1330 = vmatpush1.msra.mxu0 0.0
        %1331 = vmatprep.subr.mxu0 0.0
        %1332 = vmatpush1.msra.mxu0 0.0
        %1333 = vmatprep.subr.mxu0 0.0
        %1334 = vmatpush1.msra.mxu0 0.0
        %1335 = vmatprep.subr.mxu0 0.0
        %1336 = vmatpush1.msra.mxu0 0.0
        %1337 = vmatprep.subr.mxu0 0.0
        %1338 = vmatpush1.msra.mxu0 0.0
        %1339 = vmatprep.subr.mxu0 0.0
        %1340 = vmatpush1.msra.mxu0 0.0
        %1341 = vmatprep.subr.mxu0 0.0
        %1342 = vmatpush1.msra.mxu0 0.0
        %1343 = vmatprep.subr.mxu0 0.0
        %1344 = vmatpush1.msra.mxu0 0.0
        %1345 = vmatprep.subr.mxu0 0.0
        %1346 = vmatpush1.msra.mxu0 0.0
        %1347 = vmatprep.subr.mxu0 0.0
        %1348 = vmatpush1.msra.mxu0 0.0
        %1349 = vmatprep.subr.mxu0 0.0
        %1350 = vmatpush1.msra.mxu0 0.0
        %1351 = vmatprep.subr.mxu0 0.0
        %1352 = vmatpush1.msra.mxu0 0.0
        %1353 = vmatprep.subr.mxu0 0.0
        %1354 = vmatpush1.msra.mxu0 0.0
        %1355 = vmatprep.subr.mxu0 0.0
        %1356 = vmatpush1.msra.mxu0 %v1320
        %1357 = vmatprep.subr.mxu0 0.0
        %1358 = vmatpush2.msra.mxu0 0.0
        %1359 = vmatprep.subr.mxu0 0.0
        %1360 = vmatpush2.msra.mxu0 0.0
        %1361 = vmatprep.subr.mxu0 0.0
        %1362 = vmatpush2.msra.mxu0 0.0
        %1363 = vmatprep.subr.mxu0 0.0
        %1364 = vmatpush2.msra.mxu0 0.0
        %1365 = vmatprep.subr.mxu0 0.0
        %1366 = vmatpush2.msra.mxu0 0.0
        %1367 = vmatprep.subr.mxu0 0.0
        %1368 = vmatpush2.msra.mxu0 0.0
        %1369 = vmatprep.subr.mxu0 0.0
        %1370 = vmatpush2.msra.mxu0 0.0
        %1371 = vmatprep.subr.mxu0 0.0
        %1372 = vmatpush2.msra.mxu0 0.0
        %1373 = vmatprep.subr.mxu0 0.0
        %1374 = vmatpush2.msra.mxu0 0.0
        %1375 = vmatprep.subr.mxu0 0.0
        %1376 = vmatpush2.msra.mxu0 0.0
        %1377 = vmatprep.subr.mxu0 0.0
        %1378 = vmatpush2.msra.mxu0 0.0
        %1379 = vmatprep.subr.mxu0 0.0
        %1380 = vmatpush2.msra.mxu0 0.0
        %1381 = vmatprep.subr.mxu0 0.0
        %1382 = vmatpush2.msra.mxu0 0.0
        %1383 = vmatprep.subr.mxu0 0.0
        %1384 = vmatpush2.msra.mxu0 0.0
        %1385 = vmatprep.subr.mxu0 0.0
        %1386 = vmatpush2.msra.mxu0 0.0
        %1387 = vmatprep.subr.mxu0 0.0
        %1388 = vmatpush2.msra.mxu0 0.0
        %1389 = vmatprep.mubr.f32.mxu0 0.0
        %1390 = vmatmul.mubr.f32.gmra.mxu0 %v1323
        %v1391 = vpop.f32.mrf.mxu0
        %v1392 = vadd.f32 0.0, %v1391
        %v1393 = vpop.f32.mrf.mxu0
        %1394 = vdwg.mxu0
        %1395 = vrot.lane.b32.xlu0 %v1138, 64
        %v1396 = vpop.permute.xlu0 %1395
        %v1399 = vsel %vm1296, %v1318, 0
        %1401 = vmatprep.subr.mxu0 0.0
        %1402 = vmatpush1.msra.mxu0 0.0
        %1403 = vmatprep.subr.mxu0 0.0
        %1404 = vmatpush1.msra.mxu0 0.0
        %1405 = vmatprep.subr.mxu0 0.0
        %1406 = vmatpush1.msra.mxu0 0.0
        %1407 = vmatprep.subr.mxu0 0.0
        %1408 = vmatpush1.msra.mxu0 0.0
        %1409 = vmatprep.subr.mxu0 0.0
        %1410 = vmatpush1.msra.mxu0 0.0
        %1411 = vmatprep.subr.mxu0 0.0
        %1412 = vmatpush1.msra.mxu0 0.0
        %1413 = vmatprep.subr.mxu0 0.0
        %1414 = vmatpush1.msra.mxu0 0.0
        %1415 = vmatprep.subr.mxu0 0.0
        %1416 = vmatpush1.msra.mxu0 0.0
        %1417 = vmatprep.subr.mxu0 0.0
        %1418 = vmatpush1.msra.mxu0 0.0
        %1419 = vmatprep.subr.mxu0 0.0
        %1420 = vmatpush1.msra.mxu0 0.0
        %1421 = vmatprep.subr.mxu0 0.0
        %1422 = vmatpush1.msra.mxu0 0.0
        %1423 = vmatprep.subr.mxu0 0.0
        %1424 = vmatpush1.msra.mxu0 0.0
        %1425 = vmatprep.subr.mxu0 0.0
        %1426 = vmatpush1.msra.mxu0 0.0
        %1427 = vmatprep.subr.mxu0 0.0
        %1428 = vmatpush1.msra.mxu0 0.0
        %1429 = vmatprep.subr.mxu0 0.0
        %1430 = vmatpush1.msra.mxu0 0.0
        %1431 = vmatprep.subr.mxu0 0.0
        %1432 = vmatpush1.msra.mxu0 %v1396
        %1433 = vmatprep.subr.mxu0 0.0
        %1434 = vmatpush2.msra.mxu0 0.0
        %1435 = vmatprep.subr.mxu0 0.0
        %1436 = vmatpush2.msra.mxu0 0.0
        %1437 = vmatprep.subr.mxu0 0.0
        %1438 = vmatpush2.msra.mxu0 0.0
        %1439 = vmatprep.subr.mxu0 0.0
        %1440 = vmatpush2.msra.mxu0 0.0
        %1441 = vmatprep.subr.mxu0 0.0
        %1442 = vmatpush2.msra.mxu0 0.0
        %1443 = vmatprep.subr.mxu0 0.0
        %1444 = vmatpush2.msra.mxu0 0.0
        %1445 = vmatprep.subr.mxu0 0.0
        %1446 = vmatpush2.msra.mxu0 0.0
        %1447 = vmatprep.subr.mxu0 0.0
        %1448 = vmatpush2.msra.mxu0 0.0
        %1449 = vmatprep.subr.mxu0 0.0
        %1450 = vmatpush2.msra.mxu0 0.0
        %1451 = vmatprep.subr.mxu0 0.0
        %1452 = vmatpush2.msra.mxu0 0.0
        %1453 = vmatprep.subr.mxu0 0.0
        %1454 = vmatpush2.msra.mxu0 0.0
        %1455 = vmatprep.subr.mxu0 0.0
        %1456 = vmatpush2.msra.mxu0 0.0
        %1457 = vmatprep.subr.mxu0 0.0
        %1458 = vmatpush2.msra.mxu0 0.0
        %1459 = vmatprep.subr.mxu0 0.0
        %1460 = vmatpush2.msra.mxu0 0.0
        %1461 = vmatprep.subr.mxu0 0.0
        %1462 = vmatpush2.msra.mxu0 0.0
        %1463 = vmatprep.subr.mxu0 0.0
        %1464 = vmatpush2.msra.mxu0 0.0
        %1465 = vmatprep.mubr.f32.mxu0 0.0
        %1466 = vmatmul.mubr.f32.gmra.mxu0 %v1399
        %v1467 = vpop.f32.mrf.mxu0
        %v1468 = vadd.f32 0.0, %v1467
        %v1469 = vpop.f32.mrf.mxu0
        %1470 = vdwg.mxu0
        %1471 = vrot.lane.b32.xlu0 %v1133, 112
        %v1472 = vpop.permute.xlu0 %1471
        %1473 = vrot.lane.b32.xlu0 %v1133, 80
        %v1474 = vpop.permute.xlu0 %1473
        %v1475 = vsel %vm1144, %v1472, 0
        %v1477 = vsel %vm1144, %v1474, 0
        %1479 = vmatprep.subr.mxu0 0.0
        %1480 = vmatpush1.xpose.msra.mxu0 0.0
        %1481 = vmatprep.subr.mxu0 0.0
        %1482 = vmatpush1.xpose.msra.mxu0 0.0
        %1483 = vmatprep.subr.mxu0 0.0
        %1484 = vmatpush1.xpose.msra.mxu0 0.0
        %1485 = vmatprep.subr.mxu0 0.0
        %1486 = vmatpush1.xpose.msra.mxu0 0.0
        %1487 = vmatprep.subr.mxu0 0.0
        %1488 = vmatpush1.xpose.msra.mxu0 0.0
        %1489 = vmatprep.subr.mxu0 0.0
        %1490 = vmatpush1.xpose.msra.mxu0 0.0
        %1491 = vmatprep.subr.mxu0 0.0
        %1492 = vmatpush1.xpose.msra.mxu0 0.0
        %1493 = vmatprep.subr.mxu0 0.0
        %1494 = vmatpush1.xpose.msra.mxu0 0.0
        %1495 = vmatprep.subr.mxu0 0.0
        %1496 = vmatpush1.xpose.msra.mxu0 0.0
        %1497 = vmatprep.subr.mxu0 0.0
        %1498 = vmatpush1.xpose.msra.mxu0 0.0
        %1499 = vmatprep.subr.mxu0 0.0
        %1500 = vmatpush1.xpose.msra.mxu0 0.0
        %1501 = vmatprep.subr.mxu0 0.0
        %1502 = vmatpush1.xpose.msra.mxu0 0.0
        %1503 = vmatprep.subr.mxu0 0.0
        %1504 = vmatpush1.xpose.msra.mxu0 0.0
        %1505 = vmatprep.subr.mxu0 0.0
        %1506 = vmatpush1.xpose.msra.mxu0 0.0
        %1507 = vmatprep.subr.mxu0 0.0
        %1508 = vmatpush1.xpose.msra.mxu0 0.0
        %1509 = vmatprep.subr.mxu0 0.0
        %1510 = vmatpush1.xpose.msra.mxu0 %v1477
        %1511 = vmatprep.subr.mxu0 0.0
        %1512 = vmatpush2.xpose.msra.mxu0 0.0
        %1513 = vmatprep.subr.mxu0 0.0
        %1514 = vmatpush2.xpose.msra.mxu0 0.0
        %1515 = vmatprep.subr.mxu0 0.0
        %1516 = vmatpush2.xpose.msra.mxu0 0.0
        %1517 = vmatprep.subr.mxu0 0.0
        %1518 = vmatpush2.xpose.msra.mxu0 0.0
        %1519 = vmatprep.subr.mxu0 0.0
        %1520 = vmatpush2.xpose.msra.mxu0 0.0
        %1521 = vmatprep.subr.mxu0 0.0
        %1522 = vmatpush2.xpose.msra.mxu0 0.0
        %1523 = vmatprep.subr.mxu0 0.0
        %1524 = vmatpush2.xpose.msra.mxu0 0.0
        %1525 = vmatprep.subr.mxu0 0.0
        %1526 = vmatpush2.xpose.msra.mxu0 0.0
        %1527 = vmatprep.subr.mxu0 0.0
        %1528 = vmatpush2.xpose.msra.mxu0 0.0
        %1529 = vmatprep.subr.mxu0 0.0
        %1530 = vmatpush2.xpose.msra.mxu0 0.0
        %1531 = vmatprep.subr.mxu0 0.0
        %1532 = vmatpush2.xpose.msra.mxu0 0.0
        %1533 = vmatprep.subr.mxu0 0.0
        %1534 = vmatpush2.xpose.msra.mxu0 0.0
        %1535 = vmatprep.subr.mxu0 0.0
        %1536 = vmatpush2.xpose.msra.mxu0 0.0
        %1537 = vmatprep.subr.mxu0 0.0
        %1538 = vmatpush2.xpose.msra.mxu0 0.0
        %1539 = vmatprep.subr.mxu0 0.0
        %1540 = vmatpush2.xpose.msra.mxu0 0.0
        %1541 = vmatprep.subr.mxu0 0.0
        %1542 = vmatpush2.xpose.msra.mxu0 0.0
        %1543 = vmatprep.mubr.f32.mxu0 0.0
        %1544 = vmatmul.mubr.f32.gmra.mxu0 %v1475
        %v1545 = vpop.f32.mrf.mxu0
        %v1546 = vadd.f32 %v1046, %v1545
        %v1547 = vpop.f32.mrf.mxu0
        %1548 = vdwg.mxu0
        %1549 = vrot.lane.b32.xlu0 %v1138, 112
        %v1550 = vpop.permute.xlu0 %1549
        %1551 = vrot.lane.b32.xlu0 %v1138, 80
        %v1552 = vpop.permute.xlu0 %1551
        %v1553 = vsel %vm1144, %v1550, 0
        %v1555 = vsel %vm1144, %v1552, 0
        %1557 = vmatprep.subr.mxu0 0.0
        %1558 = vmatpush1.xpose.msra.mxu0 0.0
        %1559 = vmatprep.subr.mxu0 0.0
        %1560 = vmatpush1.xpose.msra.mxu0 0.0
        %1561 = vmatprep.subr.mxu0 0.0
        %1562 = vmatpush1.xpose.msra.mxu0 0.0
        %1563 = vmatprep.subr.mxu0 0.0
        %1564 = vmatpush1.xpose.msra.mxu0 0.0
        %1565 = vmatprep.subr.mxu0 0.0
        %1566 = vmatpush1.xpose.msra.mxu0 0.0
        %1567 = vmatprep.subr.mxu0 0.0
        %1568 = vmatpush1.xpose.msra.mxu0 0.0
        %1569 = vmatprep.subr.mxu0 0.0
        %1570 = vmatpush1.xpose.msra.mxu0 0.0
        %1571 = vmatprep.subr.mxu0 0.0
        %1572 = vmatpush1.xpose.msra.mxu0 0.0
        %1573 = vmatprep.subr.mxu0 0.0
        %1574 = vmatpush1.xpose.msra.mxu0 0.0
        %1575 = vmatprep.subr.mxu0 0.0
        %1576 = vmatpush1.xpose.msra.mxu0 0.0
        %1577 = vmatprep.subr.mxu0 0.0
        %1578 = vmatpush1.xpose.msra.mxu0 0.0
        %1579 = vmatprep.subr.mxu0 0.0
        %1580 = vmatpush1.xpose.msra.mxu0 0.0
        %1581 = vmatprep.subr.mxu0 0.0
        %1582 = vmatpush1.xpose.msra.mxu0 0.0
        %1583 = vmatprep.subr.mxu0 0.0
        %1584 = vmatpush1.xpose.msra.mxu0 0.0
        %1585 = vmatprep.subr.mxu0 0.0
        %1586 = vmatpush1.xpose.msra.mxu0 0.0
        %1587 = vmatprep.subr.mxu0 0.0
        %1588 = vmatpush1.xpose.msra.mxu0 %v1555
        %1589 = vmatprep.subr.mxu0 0.0
        %1590 = vmatpush2.xpose.msra.mxu0 0.0
        %1591 = vmatprep.subr.mxu0 0.0
        %1592 = vmatpush2.xpose.msra.mxu0 0.0
        %1593 = vmatprep.subr.mxu0 0.0
        %1594 = vmatpush2.xpose.msra.mxu0 0.0
        %1595 = vmatprep.subr.mxu0 0.0
        %1596 = vmatpush2.xpose.msra.mxu0 0.0
        %1597 = vmatprep.subr.mxu0 0.0
        %1598 = vmatpush2.xpose.msra.mxu0 0.0
        %1599 = vmatprep.subr.mxu0 0.0
        %1600 = vmatpush2.xpose.msra.mxu0 0.0
        %1601 = vmatprep.subr.mxu0 0.0
        %1602 = vmatpush2.xpose.msra.mxu0 0.0
        %1603 = vmatprep.subr.mxu0 0.0
        %1604 = vmatpush2.xpose.msra.mxu0 0.0
        %1605 = vmatprep.subr.mxu0 0.0
        %1606 = vmatpush2.xpose.msra.mxu0 0.0
        %1607 = vmatprep.subr.mxu0 0.0
        %1608 = vmatpush2.xpose.msra.mxu0 0.0
        %1609 = vmatprep.subr.mxu0 0.0
        %1610 = vmatpush2.xpose.msra.mxu0 0.0
        %1611 = vmatprep.subr.mxu0 0.0
        %1612 = vmatpush2.xpose.msra.mxu0 0.0
        %1613 = vmatprep.subr.mxu0 0.0
        %1614 = vmatpush2.xpose.msra.mxu0 0.0
        %1615 = vmatprep.subr.mxu0 0.0
        %1616 = vmatpush2.xpose.msra.mxu0 0.0
        %1617 = vmatprep.subr.mxu0 0.0
        %1618 = vmatpush2.xpose.msra.mxu0 0.0
        %1619 = vmatprep.subr.mxu0 0.0
        %1620 = vmatpush2.xpose.msra.mxu0 0.0
        %1621 = vmatprep.mubr.f32.mxu0 0.0
        %1622 = vmatmul.mubr.f32.gmra.mxu0 %v1553
        %v1623 = vpop.f32.mrf.mxu0
        %v1624 = vadd.f32 %v1047, %v1623
        %v1625 = vpop.f32.mrf.mxu0
        %1626 = vdwg.mxu0
        %v1627 = vsel %vm1296, %v1546, -inf
        %1628 = vmax.xlane.f32.xlu0 %v1627
        %v1629 = vpop.xlane.xlu0 %1628
        %v1630 = vsel %vm1296, %v1624, -inf
        %1631 = vmax.xlane.f32.xlu0 %v1630
        %v1632 = vpop.xlane.xlu0 %1631
        %v1633 = vsub.f32 %v1546, %v1629
        %v1634 = vsub.f32 %v1624, %v1632
        %v1635 = vmul.f32 %v1633, 1.442695
        %v1636 = vpow.pop %v1635
        %v1637 = vmul.f32 %v1634, 1.442695
        %v1638 = vpow.pop %v1637
        %v1639 = vsel %vm1296, %v1636, 0.0
        %1640 = vadd.xlane.f32.xlu0 %v1639
        %v1641 = vpop.xlane.xlu0 %1640
        %v1642 = vsel %vm1296, %v1638, 0.0
        %1643 = vadd.xlane.f32.xlu0 %v1642
        %v1644 = vpop.xlane.xlu0 %1643
        %v1645 = vrcp.pop %v1641
        %v1646 = vrcp.pop %v1644
        %v1647 = vmul.f32 %v1636, %v1645
        %v1648 = vmul.f32 %v1638, %v1646
        %1649 = vrot.lane.b32.xlu0 %v1133, 48
        %v1650 = vpop.permute.xlu0 %1649
        %v1653 = vsel %vm1296, %v1647, 0
        %1655 = vmatprep.subr.mxu0 0.0
        %1656 = vmatpush1.msra.mxu0 0.0
        %1657 = vmatprep.subr.mxu0 0.0
        %1658 = vmatpush1.msra.mxu0 0.0
        %1659 = vmatprep.subr.mxu0 0.0
        %1660 = vmatpush1.msra.mxu0 0.0
        %1661 = vmatprep.subr.mxu0 0.0
        %1662 = vmatpush1.msra.mxu0 0.0
        %1663 = vmatprep.subr.mxu0 0.0
        %1664 = vmatpush1.msra.mxu0 0.0
        %1665 = vmatprep.subr.mxu0 0.0
        %1666 = vmatpush1.msra.mxu0 0.0
        %1667 = vmatprep.subr.mxu0 0.0
        %1668 = vmatpush1.msra.mxu0 0.0
        %1669 = vmatprep.subr.mxu0 0.0
        %1670 = vmatpush1.msra.mxu0 0.0
        %1671 = vmatprep.subr.mxu0 0.0
        %1672 = vmatpush1.msra.mxu0 0.0
        %1673 = vmatprep.subr.mxu0 0.0
        %1674 = vmatpush1.msra.mxu0 0.0
        %1675 = vmatprep.subr.mxu0 0.0
        %1676 = vmatpush1.msra.mxu0 0.0
        %1677 = vmatprep.subr.mxu0 0.0
        %1678 = vmatpush1.msra.mxu0 0.0
        %1679 = vmatprep.subr.mxu0 0.0
        %1680 = vmatpush1.msra.mxu0 0.0
        %1681 = vmatprep.subr.mxu0 0.0
        %1682 = vmatpush1.msra.mxu0 0.0
        %1683 = vmatprep.subr.mxu0 0.0
        %1684 = vmatpush1.msra.mxu0 0.0
        %1685 = vmatprep.subr.mxu0 0.0
        %1686 = vmatpush1.msra.mxu0 %v1650
        %1687 = vmatprep.subr.mxu0 0.0
        %1688 = vmatpush2.msra.mxu0 0.0
        %1689 = vmatprep.subr.mxu0 0.0
        %1690 = vmatpush2.msra.mxu0 0.0
        %1691 = vmatprep.subr.mxu0 0.0
        %1692 = vmatpush2.msra.mxu0 0.0
        %1693 = vmatprep.subr.mxu0 0.0
        %1694 = vmatpush2.msra.mxu0 0.0
        %1695 = vmatprep.subr.mxu0 0.0
        %1696 = vmatpush2.msra.mxu0 0.0
        %1697 = vmatprep.subr.mxu0 0.0
        %1698 = vmatpush2.msra.mxu0 0.0
        %1699 = vmatprep.subr.mxu0 0.0
        %1700 = vmatpush2.msra.mxu0 0.0
        %1701 = vmatprep.subr.mxu0 0.0
        %1702 = vmatpush2.msra.mxu0 0.0
        %1703 = vmatprep.subr.mxu0 0.0
        %1704 = vmatpush2.msra.mxu0 0.0
        %1705 = vmatprep.subr.mxu0 0.0
        %1706 = vmatpush2.msra.mxu0 0.0
        %1707 = vmatprep.subr.mxu0 0.0
        %1708 = vmatpush2.msra.mxu0 0.0
        %1709 = vmatprep.subr.mxu0 0.0
        %1710 = vmatpush2.msra.mxu0 0.0
        %1711 = vmatprep.subr.mxu0 0.0
        %1712 = vmatpush2.msra.mxu0 0.0
        %1713 = vmatprep.subr.mxu0 0.0
        %1714 = vmatpush2.msra.mxu0 0.0
        %1715 = vmatprep.subr.mxu0 0.0
        %1716 = vmatpush2.msra.mxu0 0.0
        %1717 = vmatprep.subr.mxu0 0.0
        %1718 = vmatpush2.msra.mxu0 0.0
        %1719 = vmatprep.mubr.f32.mxu0 0.0
        %1720 = vmatmul.mubr.f32.gmra.mxu0 %v1653
        %v1721 = vpop.f32.mrf.mxu0
        %v1722 = vadd.f32 0.0, %v1721
        %v1723 = vpop.f32.mrf.mxu0
        %1724 = vdwg.mxu0
        %1725 = vrot.lane.b32.xlu0 %v1138, 48
        %v1726 = vpop.permute.xlu0 %1725
        %v1729 = vsel %vm1296, %v1648, 0
        %1731 = vmatprep.subr.mxu0 0.0
        %1732 = vmatpush1.msra.mxu0 0.0
        %1733 = vmatprep.subr.mxu0 0.0
        %1734 = vmatpush1.msra.mxu0 0.0
        %1735 = vmatprep.subr.mxu0 0.0
        %1736 = vmatpush1.msra.mxu0 0.0
        %1737 = vmatprep.subr.mxu0 0.0
        %1738 = vmatpush1.msra.mxu0 0.0
        %1739 = vmatprep.subr.mxu0 0.0
        %1740 = vmatpush1.msra.mxu0 0.0
        %1741 = vmatprep.subr.mxu0 0.0
        %1742 = vmatpush1.msra.mxu0 0.0
        %1743 = vmatprep.subr.mxu0 0.0
        %1744 = vmatpush1.msra.mxu0 0.0
        %1745 = vmatprep.subr.mxu0 0.0
        %1746 = vmatpush1.msra.mxu0 0.0
        %1747 = vmatprep.subr.mxu0 0.0
        %1748 = vmatpush1.msra.mxu0 0.0
        %1749 = vmatprep.subr.mxu0 0.0
        %1750 = vmatpush1.msra.mxu0 0.0
        %1751 = vmatprep.subr.mxu0 0.0
        %1752 = vmatpush1.msra.mxu0 0.0
        %1753 = vmatprep.subr.mxu0 0.0
        %1754 = vmatpush1.msra.mxu0 0.0
        %1755 = vmatprep.subr.mxu0 0.0
        %1756 = vmatpush1.msra.mxu0 0.0
        %1757 = vmatprep.subr.mxu0 0.0
        %1758 = vmatpush1.msra.mxu0 0.0
        %1759 = vmatprep.subr.mxu0 0.0
        %1760 = vmatpush1.msra.mxu0 0.0
        %1761 = vmatprep.subr.mxu0 0.0
        %1762 = vmatpush1.msra.mxu0 %v1726
        %1763 = vmatprep.subr.mxu0 0.0
        %1764 = vmatpush2.msra.mxu0 0.0
        %1765 = vmatprep.subr.mxu0 0.0
        %1766 = vmatpush2.msra.mxu0 0.0
        %1767 = vmatprep.subr.mxu0 0.0
        %1768 = vmatpush2.msra.mxu0 0.0
        %1769 = vmatprep.subr.mxu0 0.0
        %1770 = vmatpush2.msra.mxu0 0.0
        %1771 = vmatprep.subr.mxu0 0.0
        %1772 = vmatpush2.msra.mxu0 0.0
        %1773 = vmatprep.subr.mxu0 0.0
        %1774 = vmatpush2.msra.mxu0 0.0
        %1775 = vmatprep.subr.mxu0 0.0
        %1776 = vmatpush2.msra.mxu0 0.0
        %1777 = vmatprep.subr.mxu0 0.0
        %1778 = vmatpush2.msra.mxu0 0.0
        %1779 = vmatprep.subr.mxu0 0.0
        %1780 = vmatpush2.msra.mxu0 0.0
        %1781 = vmatprep.subr.mxu0 0.0
        %1782 = vmatpush2.msra.mxu0 0.0
        %1783 = vmatprep.subr.mxu0 0.0
        %1784 = vmatpush2.msra.mxu0 0.0
        %1785 = vmatprep.subr.mxu0 0.0
        %1786 = vmatpush2.msra.mxu0 0.0
        %1787 = vmatprep.subr.mxu0 0.0
        %1788 = vmatpush2.msra.mxu0 0.0
        %1789 = vmatprep.subr.mxu0 0.0
        %1790 = vmatpush2.msra.mxu0 0.0
        %1791 = vmatprep.subr.mxu0 0.0
        %1792 = vmatpush2.msra.mxu0 0.0
        %1793 = vmatprep.subr.mxu0 0.0
        %1794 = vmatpush2.msra.mxu0 0.0
        %1795 = vmatprep.mubr.f32.mxu0 0.0
        %1796 = vmatmul.mubr.f32.gmra.mxu0 %v1729
        %v1797 = vpop.f32.mrf.mxu0
        %v1798 = vadd.f32 0.0, %v1797
        %v1799 = vpop.f32.mrf.mxu0
        %1800 = vdwg.mxu0
        %1803 = vrot.lane.b32.xlu0 %v1722, 16
        %v1804 = vpop.permute.xlu0 %1803
        %1805 = vrot.lane.b32.xlu0 %v1798, 16
        %v1806 = vpop.permute.xlu0 %1805
        %v1809 = vsel %vm1144, %v1392, %v1804
        %v1810 = vsel %vm1144, %v1468, %v1806
        %v1811 = vld [vmem:[%s979] sm:$0xff]
        %v1812 = vld [vmem:[%s979 + $0x8] sm:$0xff]
        %v1813 = vld [vmem:[%s979 + $0x10] sm:$0xff]
        %v1814 = vld [vmem:[%s979 + $0x18] sm:$0xff]
        %v1815 = vld [vmem:[%s819] sm:$0x1]
        %v1817 = vlaneseq
        %v1818 = vshrl.u32 %v1817, 7
        %v1819 = vsub.s32 0, %v1818
        %v1820 = vrot.slane %v1815, %v1819
        %v1823 = vsel %vm1059, %v1809, 0
        %v1826 = vsel %vm1059, %v1810, 0
        %1828 = vmatprep.subr.mxu0 0.0
        %1829 = vmatpush1.msra.mxu0 0.0
        %1830 = vmatprep.subr.mxu0 0.0
        %1831 = vmatpush1.msra.mxu0 0.0
        %1832 = vmatprep.subr.mxu0 0.0
        %1833 = vmatpush1.msra.mxu0 0.0
        %1834 = vmatprep.subr.mxu0 0.0
        %1835 = vmatpush1.msra.mxu0 0.0
        %1836 = vmatprep.subr.mxu0 0.0
        %1837 = vmatpush1.msra.mxu0 0.0
        %1838 = vmatprep.subr.mxu0 0.0
        %1839 = vmatpush1.msra.mxu0 0.0
        %1840 = vmatprep.subr.mxu0 0.0
        %1841 = vmatpush1.msra.mxu0 0.0
        %1842 = vmatprep.subr.mxu0 0.0
        %1843 = vmatpush1.msra.mxu0 0.0
        %1844 = vmatprep.subr.mxu0 0.0
        %1845 = vmatpush1.msra.mxu0 0.0
        %1846 = vmatprep.subr.mxu0 0.0
        %1847 = vmatpush1.msra.mxu0 0.0
        %1848 = vmatprep.subr.mxu0 0.0
        %1849 = vmatpush1.msra.mxu0 0.0
        %1850 = vmatprep.subr.mxu0 0.0
        %1851 = vmatpush1.msra.mxu0 0.0
        %1852 = vmatprep.subr.mxu0 0.0
        %1853 = vmatpush1.msra.mxu0 %v1814
        %1854 = vmatprep.subr.mxu0 0.0
        %1855 = vmatpush1.msra.mxu0 %v1813
        %1856 = vmatprep.subr.mxu0 0.0
        %1857 = vmatpush1.msra.mxu0 %v1812
        %1858 = vmatprep.subr.mxu0 0.0
        %1859 = vmatpush1.msra.mxu0 %v1811
        %1860 = vmatprep.subr.mxu0 0.0
        %1861 = vmatpush2.msra.mxu0 0.0
        %1862 = vmatprep.subr.mxu0 0.0
        %1863 = vmatpush2.msra.mxu0 0.0
        %1864 = vmatprep.subr.mxu0 0.0
        %1865 = vmatpush2.msra.mxu0 0.0
        %1866 = vmatprep.subr.mxu0 0.0
        %1867 = vmatpush2.msra.mxu0 0.0
        %1868 = vmatprep.subr.mxu0 0.0
        %1869 = vmatpush2.msra.mxu0 0.0
        %1870 = vmatprep.subr.mxu0 0.0
        %1871 = vmatpush2.msra.mxu0 0.0
        %1872 = vmatprep.subr.mxu0 0.0
        %1873 = vmatpush2.msra.mxu0 0.0
        %1874 = vmatprep.subr.mxu0 0.0
        %1875 = vmatpush2.msra.mxu0 0.0
        %1876 = vmatprep.subr.mxu0 0.0
        %1877 = vmatpush2.msra.mxu0 0.0
        %1878 = vmatprep.subr.mxu0 0.0
        %1879 = vmatpush2.msra.mxu0 0.0
        %1880 = vmatprep.subr.mxu0 0.0
        %1881 = vmatpush2.msra.mxu0 0.0
        %1882 = vmatprep.subr.mxu0 0.0
        %1883 = vmatpush2.msra.mxu0 0.0
        %1884 = vmatprep.subr.mxu0 0.0
        %1885 = vmatpush2.msra.mxu0 0.0
        %1886 = vmatprep.subr.mxu0 0.0
        %1887 = vmatpush2.msra.mxu0 0.0
        %1888 = vmatprep.subr.mxu0 0.0
        %1889 = vmatpush2.msra.mxu0 0.0
        %1890 = vmatprep.subr.mxu0 0.0
        %1891 = vmatpush2.msra.mxu0 0.0
        %1892 = vmatprep.mubr.f32.mxu0 0.0
        %1893 = vmatmul.mubr.f32.gmra.mxu0 %v1823
        %v1894 = vpop.f32.mrf.mxu0
        %v1895 = vadd.f32 %v1820, %v1894
        %v1896 = vpop.f32.mrf.mxu0
        %1897 = vmatprep.mubr.f32.mxu0 0.0
        %1898 = vmatmul.mubr.f32.gmra.mxu0 %v1826
        %v1899 = vpop.f32.mrf.mxu0
        %v1900 = vadd.f32 %v1820, %v1899
        %v1901 = vpop.f32.mrf.mxu0
        %1902 = vdwg.mxu0
        %v1903 = vadd.f32 %v1895, %v1044
        %v1904 = vadd.f32 %v1900, %v1045
        %v1905 = vld [vmem:[%s827] sm:$0x1]
        %v1906 = vld [vmem:[%s835] sm:$0x1]
        %v1907 = vsel %vm1059, %v1903, 0.0
        %1908 = vadd.xlane.f32.xlu0 %v1907
        %v1909 = vpop.xlane.xlu0 %1908
        %v1910 = vsel %vm1059, %v1904, 0.0
        %1911 = vadd.xlane.f32.xlu0 %v1910
        %v1912 = vpop.xlane.xlu0 %1911
        %v1913 = vrcp.pop 32.0
        %v1914 = vmul.f32 %v1909, %v1913
        %v1915 = vmul.f32 %v1912, %v1913
        %v1916 = vsub.f32 %v1903, %v1914
        %v1917 = vsub.f32 %v1904, %v1915
        %v1918 = vmul.f32 %v1916, %v1916
        %v1919 = vmul.f32 %v1917, %v1917
        %v1920 = vsel %vm1059, %v1918, 0.0
        %1921 = vadd.xlane.f32.xlu0 %v1920
        %v1922 = vpop.xlane.xlu0 %1921
        %v1923 = vsel %vm1059, %v1919, 0.0
        %1924 = vadd.xlane.f32.xlu0 %v1923
        %v1925 = vpop.xlane.xlu0 %1924
        %v1926 = vmul.f32 %v1922, %v1913
        %v1927 = vmul.f32 %v1925, %v1913
        %v1928 = vadd.f32 %v1926, 1e-12
        %v1929 = vadd.f32 %v1927, 1e-12
        %v1930 = vrsqrt.pop %v1928
        %v1931 = vrsqrt.pop %v1929
        %v1932 = vmul.f32 %v1916, %v1930
        %v1933 = vmul.f32 %v1917, %v1931
        %v1935 = vlaneseq
        %v1936 = vshrl.u32 %v1935, 7
        %v1937 = vsub.s32 0, %v1936
        %v1938 = vrot.slane %v1905, %v1937
        %v1940 = vmul.f32 %v1932, %v1938
        %v1941 = vmul.f32 %v1933, %v1938
        %v1943 = vlaneseq
        %v1944 = vshrl.u32 %v1943, 7
        %v1945 = vsub.s32 0, %v1944
        %v1946 = vrot.slane %v1906, %v1945
        %v1948 = vadd.f32 %v1940, %v1946
        %v1949 = vadd.f32 %v1941, %v1946
        %v1950 = vld [vmem:[%s984] sm:$0xff]
        %v1951 = vld [vmem:[%s984 + $0x8] sm:$0xff]
        %v1952 = vld [vmem:[%s984 + $0x10] sm:$0xff]
        %v1953 = vld [vmem:[%s984 + $0x18] sm:$0xff]
        %v1954 = vld [vmem:[%s843] sm:$0x1]
        %v1956 = vlaneseq
        %v1957 = vshrl.u32 %v1956, 7
        %v1958 = vsub.s32 0, %v1957
        %v1959 = vrot.slane %v1954, %v1958
        %v1962 = vsel %vm1059, %v1948, 0
        %v1965 = vsel %vm1059, %v1949, 0
        %1967 = vmatprep.subr.mxu0 0.0
        %1968 = vmatpush1.msra.mxu0 0.0
        %1969 = vmatprep.subr.mxu0 0.0
        %1970 = vmatpush1.msra.mxu0 0.0
        %1971 = vmatprep.subr.mxu0 0.0
        %1972 = vmatpush1.msra.mxu0 0.0
        %1973 = vmatprep.subr.mxu0 0.0
        %1974 = vmatpush1.msra.mxu0 0.0
        %1975 = vmatprep.subr.mxu0 0.0
        %1976 = vmatpush1.msra.mxu0 0.0
        %1977 = vmatprep.subr.mxu0 0.0
        %1978 = vmatpush1.msra.mxu0 0.0
        %1979 = vmatprep.subr.mxu0 0.0
        %1980 = vmatpush1.msra.mxu0 0.0
        %1981 = vmatprep.subr.mxu0 0.0
        %1982 = vmatpush1.msra.mxu0 0.0
        %1983 = vmatprep.subr.mxu0 0.0
        %1984 = vmatpush1.msra.mxu0 0.0
        %1985 = vmatprep.subr.mxu0 0.0
        %1986 = vmatpush1.msra.mxu0 0.0
        %1987 = vmatprep.subr.mxu0 0.0
        %1988 = vmatpush1.msra.mxu0 0.0
        %1989 = vmatprep.subr.mxu0 0.0
        %1990 = vmatpush1.msra.mxu0 0.0
        %1991 = vmatprep.subr.mxu0 0.0
        %1992 = vmatpush1.msra.mxu0 %v1953
        %1993 = vmatprep.subr.mxu0 0.0
        %1994 = vmatpush1.msra.mxu0 %v1952
        %1995 = vmatprep.subr.mxu0 0.0
        %1996 = vmatpush1.msra.mxu0 %v1951
        %1997 = vmatprep.subr.mxu0 0.0
        %1998 = vmatpush1.msra.mxu0 %v1950
        %1999 = vmatprep.subr.mxu0 0.0
        %2000 = vmatpush2.msra.mxu0 0.0
        %2001 = vmatprep.subr.mxu0 0.0
        %2002 = vmatpush2.msra.mxu0 0.0
        %2003 = vmatprep.subr.mxu0 0.0
        %2004 = vmatpush2.msra.mxu0 0.0
        %2005 = vmatprep.subr.mxu0 0.0
        %2006 = vmatpush2.msra.mxu0 0.0
        %2007 = vmatprep.subr.mxu0 0.0
        %2008 = vmatpush2.msra.mxu0 0.0
        %2009 = vmatprep.subr.mxu0 0.0
        %2010 = vmatpush2.msra.mxu0 0.0
        %2011 = vmatprep.subr.mxu0 0.0
        %2012 = vmatpush2.msra.mxu0 0.0
        %2013 = vmatprep.subr.mxu0 0.0
        %2014 = vmatpush2.msra.mxu0 0.0
        %2015 = vmatprep.subr.mxu0 0.0
        %2016 = vmatpush2.msra.mxu0 0.0
        %2017 = vmatprep.subr.mxu0 0.0
        %2018 = vmatpush2.msra.mxu0 0.0
        %2019 = vmatprep.subr.mxu0 0.0
        %2020 = vmatpush2.msra.mxu0 0.0
        %2021 = vmatprep.subr.mxu0 0.0
        %2022 = vmatpush2.msra.mxu0 0.0
        %2023 = vmatprep.subr.mxu0 0.0
        %2024 = vmatpush2.msra.mxu0 0.0
        %2025 = vmatprep.subr.mxu0 0.0
        %2026 = vmatpush2.msra.mxu0 0.0
        %2027 = vmatprep.subr.mxu0 0.0
        %2028 = vmatpush2.msra.mxu0 0.0
        %2029 = vmatprep.subr.mxu0 0.0
        %2030 = vmatpush2.msra.mxu0 0.0
        %2031 = vmatprep.mubr.f32.mxu0 0.0
        %2032 = vmatmul.mubr.f32.gmra.mxu0 %v1962
        %v2033 = vpop.f32.mrf.mxu0
        %v2034 = vadd.f32 %v1959, %v2033
        %v2035 = vpop.f32.mrf.mxu0
        %2036 = vmatprep.mubr.f32.mxu0 0.0
        %2037 = vmatmul.mubr.f32.gmra.mxu0 %v1965
        %v2038 = vpop.f32.mrf.mxu0
        %v2039 = vadd.f32 %v1959, %v2038
        %v2040 = vpop.f32.mrf.mxu0
        %2041 = vdwg.mxu0
        %v2042 = vmul.f32 %v2034, 0.5
        %v2043 = vmul.f32 %v2039, 0.5
        %v2044 = vmul.f32 %v2034, 0.70710677
        %v2045 = vmul.f32 %v2039, 0.70710677
        %v2046 = verf.f32.pop %v2044
        %v2047 = verf.f32.pop %v2045
        %v2048 = vadd.f32 %v2046, 1.0
        %v2049 = vadd.f32 %v2047, 1.0
        %v2050 = vmul.f32 %v2042, %v2048
        %v2051 = vmul.f32 %v2043, %v2049
        %v2052 = vld [vmem:[%s989] sm:$0xff]
        %v2053 = vld [vmem:[%s989 + $0x8] sm:$0xff]
        %v2054 = vld [vmem:[%s989 + $0x10] sm:$0xff]
        %v2055 = vld [vmem:[%s989 + $0x18] sm:$0xff]
        %v2056 = vld [vmem:[%s989 + $0x20] sm:$0xff]
        %v2057 = vld [vmem:[%s989 + $0x28] sm:$0xff]
        %v2058 = vld [vmem:[%s989 + $0x30] sm:$0xff]
        %v2059 = vld [vmem:[%s989 + $0x38] sm:$0xff]
        %v2060 = vld [vmem:[%s851] sm:$0x1]
        %v2062 = vlaneseq
        %v2063 = vshrl.u32 %v2062, 7
        %v2064 = vsub.s32 0, %v2063
        %v2065 = vrot.slane %v2060, %v2064
        %vm2067 = vcmask 523264
        %v2069 = vsel %vm2067, %v2050, 0
        %v2072 = vsel %vm2067, %v2051, 0
        %2074 = vmatprep.subr.mxu0 0.0
        %2075 = vmatpush1.msra.mxu0 0.0
        %2076 = vmatprep.subr.mxu0 0.0
        %2077 = vmatpush1.msra.mxu0 0.0
        %2078 = vmatprep.subr.mxu0 0.0
        %2079 = vmatpush1.msra.mxu0 0.0
        %2080 = vmatprep.subr.mxu0 0.0
        %2081 = vmatpush1.msra.mxu0 0.0
        %2082 = vmatprep.subr.mxu0 0.0
        %2083 = vmatpush1.msra.mxu0 0.0
        %2084 = vmatprep.subr.mxu0 0.0
        %2085 = vmatpush1.msra.mxu0 0.0
        %2086 = vmatprep.subr.mxu0 0.0
        %2087 = vmatpush1.msra.mxu0 0.0
        %2088 = vmatprep.subr.mxu0 0.0
        %2089 = vmatpush1.msra.mxu0 0.0
        %2090 = vmatprep.subr.mxu0 0.0
        %2091 = vmatpush1.msra.mxu0 %v2059
        %2092 = vmatprep.subr.mxu0 0.0
        %2093 = vmatpush1.msra.mxu0 %v2058
        %2094 = vmatprep.subr.mxu0 0.0
        %2095 = vmatpush1.msra.mxu0 %v2057
        %2096 = vmatprep.subr.mxu0 0.0
        %2097 = vmatpush1.msra.mxu0 %v2056
        %2098 = vmatprep.subr.mxu0 0.0
        %2099 = vmatpush1.msra.mxu0 %v2055
        %2100 = vmatprep.subr.mxu0 0.0
        %2101 = vmatpush1.msra.mxu0 %v2054
        %2102 = vmatprep.subr.mxu0 0.0
        %2103 = vmatpush1.msra.mxu0 %v2053
        %2104 = vmatprep.subr.mxu0 0.0
        %2105 = vmatpush1.msra.mxu0 %v2052
        %2106 = vmatprep.subr.mxu0 0.0
        %2107 = vmatpush2.msra.mxu0 0.0
        %2108 = vmatprep.subr.mxu0 0.0
        %2109 = vmatpush2.msra.mxu0 0.0
        %2110 = vmatprep.subr.mxu0 0.0
        %2111 = vmatpush2.msra.mxu0 0.0
        %2112 = vmatprep.subr.mxu0 0.0
        %2113 = vmatpush2.msra.mxu0 0.0
        %2114 = vmatprep.subr.mxu0 0.0
        %2115 = vmatpush2.msra.mxu0 0.0
        %2116 = vmatprep.subr.mxu0 0.0
        %2117 = vmatpush2.msra.mxu0 0.0
        %2118 = vmatprep.subr.mxu0 0.0
        %2119 = vmatpush2.msra.mxu0 0.0
        %2120 = vmatprep.subr.mxu0 0.0
        %2121 = vmatpush2.msra.mxu0 0.0
        %2122 = vmatprep.subr.mxu0 0.0
        %2123 = vmatpush2.msra.mxu0 0.0
        %2124 = vmatprep.subr.mxu0 0.0
        %2125 = vmatpush2.msra.mxu0 0.0
        %2126 = vmatprep.subr.mxu0 0.0
        %2127 = vmatpush2.msra.mxu0 0.0
        %2128 = vmatprep.subr.mxu0 0.0
        %2129 = vmatpush2.msra.mxu0 0.0
        %2130 = vmatprep.subr.mxu0 0.0
        %2131 = vmatpush2.msra.mxu0 0.0
        %2132 = vmatprep.subr.mxu0 0.0
        %2133 = vmatpush2.msra.mxu0 0.0
        %2134 = vmatprep.subr.mxu0 0.0
        %2135 = vmatpush2.msra.mxu0 0.0
        %2136 = vmatprep.subr.mxu0 0.0
        %2137 = vmatpush2.msra.mxu0 0.0
        %2138 = vmatprep.mubr.f32.mxu0 0.0
        %2139 = vmatmul.mubr.f32.gmra.mxu0 %v2069
        %v2140 = vpop.f32.mrf.mxu0
        %v2141 = vadd.f32 %v2065, %v2140
        %v2142 = vpop.f32.mrf.mxu0
        %2143 = vmatprep.mubr.f32.mxu0 0.0
        %2144 = vmatmul.mubr.f32.gmra.mxu0 %v2072
        %v2145 = vpop.f32.mrf.mxu0
        %v2146 = vadd.f32 %v2065, %v2145
        %v2147 = vpop.f32.mrf.mxu0
        %2148 = vdwg.mxu0
        %v2149 = vadd.f32 %v2141, %v1948
        %v2150 = vadd.f32 %v2146, %v1949
        %v2151 = vld [vmem:[%s859] sm:$0x1]
        %v2152 = vld [vmem:[%s867] sm:$0x1]
        %v2153 = vsel %vm1059, %v2149, 0.0
        %2154 = vadd.xlane.f32.xlu0 %v2153
        %v2155 = vpop.xlane.xlu0 %2154
        %v2156 = vsel %vm1059, %v2150, 0.0
        %2157 = vadd.xlane.f32.xlu0 %v2156
        %v2158 = vpop.xlane.xlu0 %2157
        %v2159 = vmul.f32 %v2155, %v1913
        %v2160 = vmul.f32 %v2158, %v1913
        %v2161 = vsub.f32 %v2149, %v2159
        %v2162 = vsub.f32 %v2150, %v2160
        %v2163 = vmul.f32 %v2161, %v2161
        %v2164 = vmul.f32 %v2162, %v2162
        %v2165 = vsel %vm1059, %v2163, 0.0
        %2166 = vadd.xlane.f32.xlu0 %v2165
        %v2167 = vpop.xlane.xlu0 %2166
        %v2168 = vsel %vm1059, %v2164, 0.0
        %2169 = vadd.xlane.f32.xlu0 %v2168
        %v2170 = vpop.xlane.xlu0 %2169
        %v2171 = vmul.f32 %v2167, %v1913
        %v2172 = vmul.f32 %v2170, %v1913
        %v2173 = vadd.f32 %v2171, 1e-12
        %v2174 = vadd.f32 %v2172, 1e-12
        %v2175 = vrsqrt.pop %v2173
        %v2176 = vrsqrt.pop %v2174
        %v2177 = vmul.f32 %v2161, %v2175
        %v2178 = vmul.f32 %v2162, %v2176
        %v2180 = vlaneseq
        %v2181 = vshrl.u32 %v2180, 7
        %v2182 = vsub.s32 0, %v2181
        %v2183 = vrot.slane %v2151, %v2182
        %v2185 = vmul.f32 %v2177, %v2183
        %v2186 = vmul.f32 %v2178, %v2183
        %v2188 = vlaneseq
        %v2189 = vshrl.u32 %v2188, 7
        %v2190 = vsub.s32 0, %v2189
        %v2191 = vrot.slane %v2152, %v2190
        %v2193 = vadd.f32 %v2185, %v2191
        %v2194 = vadd.f32 %v2186, %v2191
        %2195 = vst.msk [vmem:[#allocation2] sm:$0xff] %vm1059, %v2193
        %2196 = vst.msk [vmem:[#allocation2 + $0x8] sm:$0xff] %vm1059, %v2194
        %p2197 = scmp.eq.s32.totalorder %s37, 1
        // Predicated region
        $region153: #{tpu_custom_call.1} parent=95 // pred_check
          %p2198 = pneg %p2197
        $region154: #{tpu_custom_call.1} parent=95 // pred_check_branch
          %2200 = sbr.rel (%p2198) target = $region156
        $region155: #{tpu_custom_call.1} parent=95 // pred_region
          %v2201 = vld [vmem:[%s16] sm:$0xff]
          %v2202 = vld [vmem:[%s16 + $0x8] sm:$0xff]
          %v2203 = vld [vmem:[%s16 + $0x10] sm:$0xff]
          %v2204 = vld [vmem:[%s16 + $0x18] sm:$0xff]
          %v2205 = vld [vmem:[#allocation20] sm:$0x1]
          %v2207 = vlaneseq
          %v2208 = vshrl.u32 %v2207, 7
          %v2209 = vsub.s32 0, %v2208
          %v2210 = vrot.slane %v2205, %v2209
          %v2214 = vrot.slane %v2194, 7
          %vm2215 = vcmask 1041409
          %v2216 = vsel %vm2215, %v2214, %v2193
          %v2217 = vsel %vm1059, %v2216, 0
          %2219 = vmatprep.subr.mxu0 0.0
          %2220 = vmatpush1.msra.mxu0 0.0
          %2221 = vmatprep.subr.mxu0 0.0
          %2222 = vmatpush1.msra.mxu0 0.0
          %2223 = vmatprep.subr.mxu0 0.0
          %2224 = vmatpush1.msra.mxu0 0.0
          %2225 = vmatprep.subr.mxu0 0.0
          %2226 = vmatpush1.msra.mxu0 0.0
          %2227 = vmatprep.subr.mxu0 0.0
          %2228 = vmatpush1.msra.mxu0 0.0
          %2229 = vmatprep.subr.mxu0 0.0
          %2230 = vmatpush1.msra.mxu0 0.0
          %2231 = vmatprep.subr.mxu0 0.0
          %2232 = vmatpush1.msra.mxu0 0.0
          %2233 = vmatprep.subr.mxu0 0.0
          %2234 = vmatpush1.msra.mxu0 0.0
          %2235 = vmatprep.subr.mxu0 0.0
          %2236 = vmatpush1.msra.mxu0 0.0
          %2237 = vmatprep.subr.mxu0 0.0
          %2238 = vmatpush1.msra.mxu0 0.0
          %2239 = vmatprep.subr.mxu0 0.0
          %2240 = vmatpush1.msra.mxu0 0.0
          %2241 = vmatprep.subr.mxu0 0.0
          %2242 = vmatpush1.msra.mxu0 0.0
          %2243 = vmatprep.subr.mxu0 0.0
          %2244 = vmatpush1.msra.mxu0 %v2204
          %2245 = vmatprep.subr.mxu0 0.0
          %2246 = vmatpush1.msra.mxu0 %v2203
          %2247 = vmatprep.subr.mxu0 0.0
          %2248 = vmatpush1.msra.mxu0 %v2202
          %2249 = vmatprep.subr.mxu0 0.0
          %2250 = vmatpush1.msra.mxu0 %v2201
          %2251 = vmatprep.subr.mxu0 0.0
          %2252 = vmatpush2.msra.mxu0 0.0
          %2253 = vmatprep.subr.mxu0 0.0
          %2254 = vmatpush2.msra.mxu0 0.0
          %2255 = vmatprep.subr.mxu0 0.0
          %2256 = vmatpush2.msra.mxu0 0.0
          %2257 = vmatprep.subr.mxu0 0.0
          %2258 = vmatpush2.msra.mxu0 0.0
          %2259 = vmatprep.subr.mxu0 0.0
          %2260 = vmatpush2.msra.mxu0 0.0
          %2261 = vmatprep.subr.mxu0 0.0
          %2262 = vmatpush2.msra.mxu0 0.0
          %2263 = vmatprep.subr.mxu0 0.0
          %2264 = vmatpush2.msra.mxu0 0.0
          %2265 = vmatprep.subr.mxu0 0.0
          %2266 = vmatpush2.msra.mxu0 0.0
          %2267 = vmatprep.subr.mxu0 0.0
          %2268 = vmatpush2.msra.mxu0 0.0
          %2269 = vmatprep.subr.mxu0 0.0
          %2270 = vmatpush2.msra.mxu0 0.0
          %2271 = vmatprep.subr.mxu0 0.0
          %2272 = vmatpush2.msra.mxu0 0.0
          %2273 = vmatprep.subr.mxu0 0.0
          %2274 = vmatpush2.msra.mxu0 0.0
          %2275 = vmatprep.subr.mxu0 0.0
          %2276 = vmatpush2.msra.mxu0 0.0
          %2277 = vmatprep.subr.mxu0 0.0
          %2278 = vmatpush2.msra.mxu0 0.0
          %2279 = vmatprep.subr.mxu0 0.0
          %2280 = vmatpush2.msra.mxu0 0.0
          %2281 = vmatprep.subr.mxu0 0.0
          %2282 = vmatpush2.msra.mxu0 0.0
          %2283 = vmatprep.mubr.f32.mxu0 0.0
          %2284 = vmatmul.mubr.f32.gmra.mxu0 %v2217
          %v2285 = vpop.f32.mrf.mxu0
          %v2286 = vadd.f32 %v2210, %v2285
          %v2287 = vpop.f32.mrf.mxu0
          %2288 = vdwg.mxu0
          %2289 = vst [vmem:[#allocation21] sm:$0x3] %v2286
          %v2290 = vlaneseq
          %v2291 = vand.u32 %v2290, 127
          %vm2292 = vcmp.lt.s32.totalorder %v2291, 3
          %v2293 = vsel %vm2292, %v2286, -1e+30
          %vm2294 = vcmask 1041408
          %v2295 = vsel %vm2294, %v2293, -inf
          %2296 = vmax.xlane.f32.xlu0 %v2295
          %v2297 = vpop.xlane.xlu0 %2296
          %v2298 = vsub.f32 %v2293, %v2297
          %v2299 = vmul.f32 %v2298, 1.442695
          %v2300 = vpow.pop %v2299
          %v2301 = vsel %vm2294, %v2300, 0.0
          %2302 = vadd.xlane.f32.xlu0 %v2301
          %v2303 = vpop.xlane.xlu0 %2302
          %v2304 = vlog2.pop %v2303
          %v2305 = vmul.f32 %v2304, 0.6931472
          %v2306 = vadd.f32 %v2297, %v2305
          %v2307 = vsub.f32 %v2293, %v2306
          %v2308 = vld [vmem:[%s18] sm:$0x3]
          %2309 = vset.pattern.permute.xlu0 0
          %2310 = vperm.xlu0 %2309, %v2308
          %v2311 = vpop.permute.xlu0 %2310
          %vm2312 = vcmp.eq.s32.totalorder %v2291, %v2311
          %v2313 = vsel %vm2312, %v2307, 0.0
          %v2314 = vsel %vm2294, %v2313, 0.0
          %2315 = vadd.xlane.f32.xlu0 %v2314
          %v2316 = vpop.xlane.xlu0 %2315
          %v2317 = vrot.slane %v2316, 4
          %v2318 = vadd.f32 %v2316, %v2317
          %v2319 = vrot.slane %v2318, 2
          %v2320 = vadd.f32 %v2318, %v2319
          %v2321 = vrot.slane %v2320, 1
          %v2322 = vadd.f32 %v2320, %v2321
          %s2323 = vtos %v2322
          %s2324 = ssub.f32 0.0, %s2323
          %v2325 = vrcp.pop 2.0
          %s2326 = vtos %v2325
          %s2327 = smul.f32 %s2324, %s2326
          %s2328 = scalar_lea.smem [#allocation22], 0
          %2329 = sst [smem:[%s2328]] %s2327
        $region156: #{tpu_custom_call.1} parent=95 // pred_fallthru
          _
        // Predicated region
        $region157: #{tpu_custom_call.1} parent=95 // pred_check
          %p2330 = pneg %p509
        $region158: #{tpu_custom_call.1} parent=95 // pred_check_branch
          %2332 = sbr.rel (%p2330) target = $region160
        $region159: #{tpu_custom_call.1} parent=95 // pred_region
          %s2334 = ssub.s32 32, 32
          %2335 = vsyncadd [#allocation5], %s2334
          %s2337 = sshll.u32 [#allocation21], 4
          %s2338 = int_to_ptr.vmem [resolvable:$true] %s2337
          %2340 = dma.vmem_to_hbm [thread:$0]  %s2338, 32, %s19, [#allocation5]
        $region160: #{tpu_custom_call.1} parent=95 // pred_fallthru
          _
        // Predicated region
        $region161: #{tpu_custom_call.1} parent=95 // pred_check
          %p2341 = pneg %p530
        $region162: #{tpu_custom_call.1} parent=95 // pred_check_branch
          %2343 = sbr.rel (%p2341) target = $region164
        $region163: #{tpu_custom_call.1} parent=95 // pred_region
          %s2345 = ssub.s32 16, 16
          %2346 = vsyncadd [#allocation6], %s2345
          %2349 = dma.smem_to_hbm [#allocation22], 16, %s20, [#allocation6]
        $region164: #{tpu_custom_call.1} parent=95 // pred_fallthru
          _
        // Predicated region
        $region165: #{tpu_custom_call.1} parent=95 // pred_check
          %p2350 = pneg %p509
        $region166: #{tpu_custom_call.1} parent=95 // pred_check_branch
          %2352 = sbr.rel (%p2350) target = $region168
        $region167: #{tpu_custom_call.1} parent=95 // pred_region
          %2353 = dma.done [#allocation5], 32
        $region168: #{tpu_custom_call.1} parent=95 // pred_fallthru
          _
        // Predicated region
        $region169: #{tpu_custom_call.1} parent=95 // pred_check
          %p2354 = pneg %p530
        $region170: #{tpu_custom_call.1} parent=95 // pred_check_branch
          %2356 = sbr.rel (%p2354) target = $region172
        $region171: #{tpu_custom_call.1} parent=95 // pred_region
          %2357 = dma.done [#allocation6], 16
        $region172: #{tpu_custom_call.1} parent=95 // pred_fallthru
          _
        %2358 = sfence
      $region96: #{tpu_custom_call.1} parent=5 // pred_fallthru
        _
      %p2359 = scmp.le.s32.totalorder 2, %s32
      // Predicated region
      $region173: #{tpu_custom_call.1} parent=5 // pred_check
        %p2360 = pneg %p2359
      $region174: #{tpu_custom_call.1} parent=5 // pred_check_branch
        %2362 = sbr.rel (%p2360) target = $region176
      $region175: #{tpu_custom_call.1} parent=5 // pred_region
        %s2363 = ssub.s32 %s32, 2
      $region176: #{tpu_custom_call.1} parent=5 // pred_fallthru
        _
    $region6: #{tpu_custom_call.1} parent=1 // loop_footer
      %s36 = sadd.s32 1, %s32
    $region7: #{tpu_custom_call.1} parent=1 // loop_footer_branch
      %31 = sbr.rel target = $region3
    $region8: #{tpu_custom_call.1} parent=1 // loop_exit
      _
    %2364 = vsyncpa [#allocation4], 1
    %s2365 = scalar_lea.sflag [#allocation4], 1
    %2366 = vsyncpa %s2365, 1
    %2367 = vsyncpa [#allocation8], 1
    %2368 = vsyncpa [#allocation11], 1
    %2369 = vsyncpa [#allocation5], 1
    %s2370 = scalar_lea.sflag [#allocation5], 1
    %2371 = vsyncpa %s2370, 1
    %2372 = vsyncpa [#allocation6], 1
    %s2373 = scalar_lea.sflag [#allocation6], 1
    %2374 = vsyncpa %s2373, 1

</llo_original>
